<compile_context>
chip_gen: v7x
topology: tpu7x:2x2x1
jax: 0.10.0
libtpu: 0.0.40
codegen_flags: <defaults>
</compile_context>

<pallas_src>
import math

import jax
import jax.numpy as jnp
from jax.experimental import pallas as pl
from jax.experimental.pallas import tpu as pltpu

HALO = 8                      # per-sample zero halo (lanes); >= max dilation (8)
CIN_PAD = 24                  # 20 input channels padded to 24
CH_PAD = 8                    # 3-channel activations padded to one sublane tile
OUT_CH = 3                    # real channel count of every ResBlock
N_CLASSES = 2
SLAB_W = 25                   # slab cols: 0:24 weights (max cin_pad), 24 = bias
BIAS_COL = 24
ROWS_PER_CONV = 3 * CH_PAD    # 24: taps k=0,1,2 stacked along output rows
FC_BASE = 9 * ROWS_PER_CONV   # 216


# ----------------------------------------------------------------------------
# In-kernel helpers (values only)
# ----------------------------------------------------------------------------
def _dilated_conv(x, wstk, bias, d):
    """K=3 dilated 'same' conv with the tap shifts commuted past the matmul.

    wstk rows [8k:8k+8] hold tap-k weights, so a single matmul produces all
    per-tap partial outputs; the dilation shifts become XLU lane rotations on
    8-row results.  Circular wrap is safe because every sample carries a >= d
    zero halo and the caller re-zeroes halo lanes with `mask`.
    """
    y = jnp.dot(wstk, x, preferred_element_type=jnp.float32)          # (24, W)
    w = y.shape[1]
    t0 = pltpu.roll(y[0:CH_PAD, :], d % w, axis=1)                    # x[t - d]
    t1 = y[CH_PAD:2 * CH_PAD, :]                                      # x[t]
    t2 = pltpu.roll(y[2 * CH_PAD:3 * CH_PAD, :], (-d) % w, axis=1)    # x[t + d]
    return t0 + t1 + t2 + bias


def _resblock(x, w1, b1, w2, b2, d, mask, w3=None, b3=None):
    """PyTorch ResBlock: o = relu(conv2(relu(conv1(x))) + shortcut).

    conv2's packed weights are replicated over the 3 real output channels, so
    its result already carries the channel broadcast and rows 3:8 stay zero.
    """
    r = jnp.maximum(_dilated_conv(x, w1, b1, d), 0.0) * mask           # (8, W)
    c2 = _dilated_conv(r, w2, b2, d)                                   # (8, W)
    # rb1 projection shortcut (conv3, dilation 1); later blocks: identity.
    shortcut = _dilated_conv(x, w3, b3, 1) if w3 is not None else x
    return jnp.maximum(c2 + shortcut, 0.0) * mask


# ----------------------------------------------------------------------------
# Pallas kernel: whole TCN forward, whole batch, single grid point
# ----------------------------------------------------------------------------
def tcn_kernel(xm_ref, pool_ref, w_ref, o_ref):
    x = xm_ref[0:CIN_PAD, :]                     # (24, W) batch-folded input
    mask = xm_ref[CIN_PAD:CIN_PAD + 1, :]        # (1, W) valid-lane mask

    def wb(idx, cin):
        base = idx * ROWS_PER_CONV
        return (w_ref[base:base + ROWS_PER_CONV, 0:cin],
                w_ref[base + CH_PAD:base + 2 * CH_PAD, BIAS_COL:BIAS_COL + 1])

    # slab conv order: 0 rb1.c1 | 1 rb1.c3 | 2 rb1.c2 | 3 rb2.c1 | 4 rb2.c2 |
    #                  5 rb3.c1 | 6 rb3.c2 | 7 rb4.c1 | 8 rb4.c2 | fc @ 216
    h = _resblock(x, *wb(0, CIN_PAD), *wb(2, CH_PAD), 1, mask, *wb(1, CIN_PAD))
    h = _resblock(h, *wb(3, CH_PAD), *wb(4, CH_PAD), 2, mask)
    h = _resblock(h, *wb(5, CH_PAD), *wb(6, CH_PAD), 4, mask)
    h = _resblock(h, *wb(7, CH_PAD), *wb(8, CH_PAD), 8, mask)

    # AdaptiveAvgPool1d(1) for the whole batch at once: (8, W) @ (W, Bpad).
    pooled = jnp.dot(h, pool_ref[...], preferred_element_type=jnp.float32)
    fcw = w_ref[FC_BASE:FC_BASE + CH_PAD, 0:CH_PAD]
    fcb = w_ref[FC_BASE:FC_BASE + CH_PAD, BIAS_COL:BIAS_COL + 1]
    # fc + bias, single lane-dense store (8, Bpad); rows 2:8 / cols B: are 0.
    o_ref[...] = jnp.dot(fcw, pooled, preferred_element_type=jnp.float32) + fcb


@jax.jit
def tcn_forward(x, wslab):
    """x: (B, 20, L) float32 -> (B, 2) logits (matches PyTorch TCN.forward)."""
    B, C, L = x.shape
    Lp = L + 2 * HALO
    Wreal = B * Lp
    Wpad = max(128, -(-Wreal // 128) * 128)      # lane-dense folded width
    Bpad = max(128, -(-B // 128) * 128)          # lane-dense pooled/output width

    # Fold batch into lanes: sample b occupies lanes [b*Lp+HALO, b*Lp+HALO+L),
    # channels padded 20->24 with zero rows; halo and tail-pad lanes are zero.
    xp = jnp.pad(x.astype(jnp.float32), ((0, 0), (0, CIN_PAD - C), (HALO, HALO)))
    xf = jnp.transpose(xp, (1, 0, 2)).reshape(CIN_PAD, Wreal)
    xf = jnp.pad(xf, ((0, 0), (0, Wpad - Wreal)))
    mrow = jnp.pad(jnp.ones((L,), jnp.float32), (HALO, HALO))        # (Lp,)
    mask = jnp.pad(jnp.tile(mrow, B), (0, Wpad - Wreal))[None, :]    # (1, Wpad)
    xm = jnp.concatenate([xf, mask], axis=0)                         # (25, Wpad)

    # Per-sample mean-pool matrix: poolmat[b*Lp+t, j] = 1/L iff valid and b==j.
    poolmat = (jnp.eye(B, dtype=jnp.float32)[:, None, :]
               * (mrow / L)[None, :, None]).reshape(Wreal, B)
    poolmat = jnp.pad(poolmat, ((0, Wpad - Wreal), (0, Bpad - B)))

    vmem = pl.BlockSpec(memory_space=pltpu.MemorySpace.VMEM)
    # TODO(synk): if B*L grows beyond toy sizes, tile the folded lane axis with
    # a grid and dimension_semantics=("parallel",) to use v7x's second
    # TensorCore (and re-derive VMEM tile size for its 64 MiB budget).
    out = pl.pallas_call(
        tcn_kernel,
        out_shape=jax.ShapeDtypeStruct((CH_PAD, Bpad), jnp.float32),
        in_specs=[vmem, vmem, vmem],
        out_specs=vmem,
    )(xm, poolmat, wslab)
    return out[0:N_CLASSES, 0:B].T                                   # (B, 2)


# ----------------------------------------------------------------------------
# Parameter init (PyTorch layout) + packing into the single weight slab
# ----------------------------------------------------------------------------
def init_raw_params(key):
    ks = jax.random.split(key, 11)

    def conv(k, cin, cout, ksz=3):
        k1, k2 = jax.random.split(k)
        bound = 1.0 / math.sqrt(cin * ksz)
        w = jax.random.uniform(k1, (cout, cin, ksz), jnp.float32, -bound, bound)
        b = jax.random.uniform(k2, (cout,), jnp.float32, -bound, bound)
        return w, b

    raw = {
        "rb1.conv1": conv(ks[0], 20, 3),
        "rb1.conv2": conv(ks[1], 3, 1),
        "rb1.conv3": conv(ks[2], 20, 3),
        "rb2.conv1": conv(ks[3], 3, 3),
        "rb2.conv2": conv(ks[4], 3, 1),
        "rb3.conv1": conv(ks[5], 3, 3),
        "rb3.conv2": conv(ks[6], 3, 1),
        "rb4.conv1": conv(ks[7], 3, 3),
        "rb4.conv2": conv(ks[8], 3, 1),
    }
    bound = 1.0 / math.sqrt(3)
    raw["fc"] = (jax.random.uniform(ks[9], (2, 3), jnp.float32, -bound, bound),
                 jax.random.uniform(ks[10], (2,), jnp.float32, -bound, bound))
    return raw


def _pack_conv(w, b):
    """(Cout, Cin, 3) weight + (Cout,) bias -> (24, SLAB_W) block.

    Output-row-stacked layout: rows [8k : 8k+Cout] hold tap-k weights in
    columns [0:Cin]; the bias sits at BIAS_COL of the tap-1 rows.  Every
    untouched row/column is zero (this is what keeps padded channels exact 0).
    """
    cout, cin, K = w.shape
    blk = jnp.zeros((K * CH_PAD, SLAB_W), jnp.float32)
    for k in range(K):
        blk = blk.at[k * CH_PAD:k * CH_PAD + cout, 0:cin].set(w[:, :, k])
    blk = blk.at[CH_PAD:CH_PAD + cout, BIAS_COL].set(b)
    return blk


def pack_params(raw):
    def rep(p):  # replicate conv2's single output channel over the 3 real rows
        w, b = p
        return jnp.tile(w, (OUT_CH, 1, 1)), jnp.tile(b, (OUT_CH,))

    blocks = [
        _pack_conv(*raw["rb1.conv1"]),
        _pack_conv(*raw["rb1.conv3"]),
        _pack_conv(*rep(raw["rb1.conv2"])),
        _pack_conv(*raw["rb2.conv1"]),
        _pack_conv(*rep(raw["rb2.conv2"])),
        _pack_conv(*raw["rb3.conv1"]),
        _pack_conv(*rep(raw["rb3.conv2"])),
        _pack_conv(*raw["rb4.conv1"]),
        _pack_conv(*rep(raw["rb4.conv2"])),
    ]
    fcw, fcb = raw["fc"]
    fcblk = jnp.zeros((CH_PAD, SLAB_W), jnp.float32)
    fcblk = fcblk.at[0:N_CLASSES, 0:OUT_CH].set(fcw).at[0:N_CLASSES, BIAS_COL].set(fcb)
    blocks.append(fcblk)
    return jnp.concatenate(blocks, axis=0)       # (224, 25) single weight slab


# ----------------------------------------------------------------------------
# Pure-JAX reference (mirrors PyTorch exactly) for a sanity check
# ----------------------------------------------------------------------------
def _conv1d_same_ref(x, w, b, d):
    cin, L = x.shape
    cout, _, K = w.shape
    half = (K - 1) // 2
    out = jnp.broadcast_to(b[:, None], (cout, L)).astype(jnp.float32)
    for k in range(K):
        s = (k - half) * d
        if abs(s) >= L:
            xs = jnp.zeros_like(x)
        elif s > 0:
            xs = jnp.concatenate([x[:, s:], jnp.zeros((cin, s), x.dtype)], axis=1)
        elif s < 0:
            xs = jnp.concatenate([jnp.zeros((cin, -s), x.dtype), x[:, :L + s]], axis=1)
        else:
            xs = x
        out = out + jnp.dot(w[:, :, k], xs)
    return out


def _resblock_ref(x, p1, p2, p3, d):
    r = jnp.maximum(_conv1d_same_ref(x, p1[0], p1[1], d), 0.0)
    r = _conv1d_same_ref(r, p2[0], p2[1], d)
    if x.shape[0] == p1[0].shape[0]:
        shortcut = x
    else:
        shortcut = _conv1d_same_ref(x, p3[0], p3[1], 1)
    return jnp.maximum(r + shortcut, 0.0)


def tcn_reference(x, raw):
    outs = []
    fcw, fcb = raw["fc"]
    for b in range(x.shape[0]):
        h = _resblock_ref(x[b], raw["rb1.conv1"], raw["rb1.conv2"], raw["rb1.conv3"], 1)
        h = _resblock_ref(h, raw["rb2.conv1"], raw["rb2.conv2"], None, 2)
        h = _resblock_ref(h, raw["rb3.conv1"], raw["rb3.conv2"], None, 4)
        h = _resblock_ref(h, raw["rb4.conv1"], raw["rb4.conv2"], None, 8)
        feat = jnp.mean(h, axis=1)
        outs.append(fcw @ feat + fcb)
    return jnp.stack(outs, axis=0)


if __name__ == "__main__":
    key = jax.random.PRNGKey(0)
    kx, kp = jax.random.split(key)

    B, C_in, L = 2, 20, 16                    # PyTorch NCL input (N, 20, L)
    x = jax.random.normal(kx, (B, C_in, L), jnp.float32)
    raw = init_raw_params(kp)
    wslab = pack_params(raw)

    out = tcn_forward(x, wslab)
    jax.block_until_ready(out)

    assert out.shape == (B, N_CLASSES), out.shape
    ref = tcn_reference(x, raw)
    assert jnp.allclose(out, ref, atol=1e-4, rtol=1e-4), (out, ref)

    print("KERNEL_OK")
</pallas_src>

<mosaic_0001>
module attributes {stable_mosaic.version = 11 : i64} {
  func.func @tcn_kernel(%arg0: memref<25x128xf32, #tpu.memory_space<vmem>>, %arg1: memref<128x128xf32, #tpu.memory_space<vmem>>, %arg2: memref<224x25xf32, #tpu.memory_space<vmem>>, %arg3: memref<8x128xf32, #tpu.memory_space<vmem>>) attributes {dimension_semantics = [], scalar_prefetch = 0 : i64, scratch_operands = 0 : i64, tpu.core_type = #tpu.core_type<tc>} {
    %c0 = arith.constant 0 : index
    %c0_0 = arith.constant 0 : index
    %0 = vector.load %arg0[%c0, %c0_0] : memref<25x128xf32, #tpu.memory_space<vmem>>, vector<24x128xf32>
    %c24 = arith.constant 24 : index
    %c0_1 = arith.constant 0 : index
    %1 = vector.load %arg0[%c24, %c0_1] : memref<25x128xf32, #tpu.memory_space<vmem>>, vector<1x128xf32>
    %c0_2 = arith.constant 0 : index
    %c0_3 = arith.constant 0 : index
    %2 = vector.load %arg2[%c0_2, %c0_3] : memref<224x25xf32, #tpu.memory_space<vmem>>, vector<24x24xf32>
    %c8 = arith.constant 8 : index
    %c24_4 = arith.constant 24 : index
    %3 = vector.load %arg2[%c8, %c24_4] : memref<224x25xf32, #tpu.memory_space<vmem>>, vector<8x1xf32>
    %c48 = arith.constant 48 : index
    %c0_5 = arith.constant 0 : index
    %4 = vector.load %arg2[%c48, %c0_5] : memref<224x25xf32, #tpu.memory_space<vmem>>, vector<24x8xf32>
    %c56 = arith.constant 56 : index
    %c24_6 = arith.constant 24 : index
    %5 = vector.load %arg2[%c56, %c24_6] : memref<224x25xf32, #tpu.memory_space<vmem>>, vector<8x1xf32>
    %c24_7 = arith.constant 24 : index
    %c0_8 = arith.constant 0 : index
    %6 = vector.load %arg2[%c24_7, %c0_8] : memref<224x25xf32, #tpu.memory_space<vmem>>, vector<24x24xf32>
    %c32 = arith.constant 32 : index
    %c24_9 = arith.constant 24 : index
    %7 = vector.load %arg2[%c32, %c24_9] : memref<224x25xf32, #tpu.memory_space<vmem>>, vector<8x1xf32>
    %cst = arith.constant dense<0.000000e+00> : vector<24x128xf32>
    %8 = tpu.matmul %2, %0, %cst {dimension_numbers = #tpu.dot_dimension_numbers<[1], [0], [0], [1], [0, 0, 1, 1], [], []>} : vector<24x24xf32>, vector<24x128xf32>, vector<24x128xf32> -> vector<24x128xf32>
    %9 = vector.extract_strided_slice %8 {offsets = [0, 0], sizes = [8, 128], strides = [1, 1]} : vector<24x128xf32> to vector<8x128xf32>
    %c1_i32 = arith.constant 1 : i32
    %10 = tpu.dynamic_rotate %9 by %c1_i32 dim 1 : vector<8x128xf32>, i32 -> vector<8x128xf32>
    %11 = vector.extract_strided_slice %8 {offsets = [8, 0], sizes = [8, 128], strides = [1, 1]} : vector<24x128xf32> to vector<8x128xf32>
    %12 = vector.extract_strided_slice %8 {offsets = [16, 0], sizes = [8, 128], strides = [1, 1]} : vector<24x128xf32> to vector<8x128xf32>
    %c127_i32 = arith.constant 127 : i32
    %13 = tpu.dynamic_rotate %12 by %c127_i32 dim 1 : vector<8x128xf32>, i32 -> vector<8x128xf32>
    %14 = arith.addf %10, %11 : vector<8x128xf32>
    %15 = arith.addf %14, %13 : vector<8x128xf32>
    %16 = vector.broadcast %3 : vector<8x1xf32> to vector<8x128xf32>
    %17 = arith.addf %15, %16 : vector<8x128xf32>
    %cst_10 = arith.constant 0.000000e+00 : f32
    %18 = vector.broadcast %cst_10 : f32 to vector<8x128xf32>
    %19 = arith.maximumf %17, %18 : vector<8x128xf32>
    %20 = vector.broadcast %1 : vector<1x128xf32> to vector<8x128xf32>
    %21 = arith.mulf %19, %20 : vector<8x128xf32>
    %cst_11 = arith.constant dense<0.000000e+00> : vector<24x128xf32>
    %22 = tpu.matmul %4, %21, %cst_11 {dimension_numbers = #tpu.dot_dimension_numbers<[1], [0], [0], [1], [0, 0, 1, 1], [], []>} : vector<24x8xf32>, vector<8x128xf32>, vector<24x128xf32> -> vector<24x128xf32>
    %23 = vector.extract_strided_slice %22 {offsets = [0, 0], sizes = [8, 128], strides = [1, 1]} : vector<24x128xf32> to vector<8x128xf32>
    %c1_i32_12 = arith.constant 1 : i32
    %24 = tpu.dynamic_rotate %23 by %c1_i32_12 dim 1 : vector<8x128xf32>, i32 -> vector<8x128xf32>
    %25 = vector.extract_strided_slice %22 {offsets = [8, 0], sizes = [8, 128], strides = [1, 1]} : vector<24x128xf32> to vector<8x128xf32>
    %26 = vector.extract_strided_slice %22 {offsets = [16, 0], sizes = [8, 128], strides = [1, 1]} : vector<24x128xf32> to vector<8x128xf32>
    %c127_i32_13 = arith.constant 127 : i32
    %27 = tpu.dynamic_rotate %26 by %c127_i32_13 dim 1 : vector<8x128xf32>, i32 -> vector<8x128xf32>
    %28 = arith.addf %24, %25 : vector<8x128xf32>
    %29 = arith.addf %28, %27 : vector<8x128xf32>
    %30 = vector.broadcast %5 : vector<8x1xf32> to vector<8x128xf32>
    %31 = arith.addf %29, %30 : vector<8x128xf32>
    %cst_14 = arith.constant dense<0.000000e+00> : vector<24x128xf32>
    %32 = tpu.matmul %6, %0, %cst_14 {dimension_numbers = #tpu.dot_dimension_numbers<[1], [0], [0], [1], [0, 0, 1, 1], [], []>} : vector<24x24xf32>, vector<24x128xf32>, vector<24x128xf32> -> vector<24x128xf32>
    %33 = vector.extract_strided_slice %32 {offsets = [0, 0], sizes = [8, 128], strides = [1, 1]} : vector<24x128xf32> to vector<8x128xf32>
    %c1_i32_15 = arith.constant 1 : i32
    %34 = tpu.dynamic_rotate %33 by %c1_i32_15 dim 1 : vector<8x128xf32>, i32 -> vector<8x128xf32>
    %35 = vector.extract_strided_slice %32 {offsets = [8, 0], sizes = [8, 128], strides = [1, 1]} : vector<24x128xf32> to vector<8x128xf32>
    %36 = vector.extract_strided_slice %32 {offsets = [16, 0], sizes = [8, 128], strides = [1, 1]} : vector<24x128xf32> to vector<8x128xf32>
    %c127_i32_16 = arith.constant 127 : i32
    %37 = tpu.dynamic_rotate %36 by %c127_i32_16 dim 1 : vector<8x128xf32>, i32 -> vector<8x128xf32>
    %38 = arith.addf %34, %35 : vector<8x128xf32>
    %39 = arith.addf %38, %37 : vector<8x128xf32>
    %40 = vector.broadcast %7 : vector<8x1xf32> to vector<8x128xf32>
    %41 = arith.addf %39, %40 : vector<8x128xf32>
    %42 = arith.addf %31, %41 : vector<8x128xf32>
    %cst_17 = arith.constant 0.000000e+00 : f32
    %43 = vector.broadcast %cst_17 : f32 to vector<8x128xf32>
    %44 = arith.maximumf %42, %43 : vector<8x128xf32>
    %45 = vector.broadcast %1 : vector<1x128xf32> to vector<8x128xf32>
    %46 = arith.mulf %44, %45 : vector<8x128xf32>
    %c72 = arith.constant 72 : index
    %c0_18 = arith.constant 0 : index
    %47 = vector.load %arg2[%c72, %c0_18] : memref<224x25xf32, #tpu.memory_space<vmem>>, vector<24x8xf32>
    %c80 = arith.constant 80 : index
    %c24_19 = arith.constant 24 : index
    %48 = vector.load %arg2[%c80, %c24_19] : memref<224x25xf32, #tpu.memory_space<vmem>>, vector<8x1xf32>
    %c96 = arith.constant 96 : index
    %c0_20 = arith.constant 0 : index
    %49 = vector.load %arg2[%c96, %c0_20] : memref<224x25xf32, #tpu.memory_space<vmem>>, vector<24x8xf32>
    %c104 = arith.constant 104 : index
    %c24_21 = arith.constant 24 : index
    %50 = vector.load %arg2[%c104, %c24_21] : memref<224x25xf32, #tpu.memory_space<vmem>>, vector<8x1xf32>
    %cst_22 = arith.constant dense<0.000000e+00> : vector<24x128xf32>
    %51 = tpu.matmul %47, %46, %cst_22 {dimension_numbers = #tpu.dot_dimension_numbers<[1], [0], [0], [1], [0, 0, 1, 1], [], []>} : vector<24x8xf32>, vector<8x128xf32>, vector<24x128xf32> -> vector<24x128xf32>
    %52 = vector.extract_strided_slice %51 {offsets = [0, 0], sizes = [8, 128], strides = [1, 1]} : vector<24x128xf32> to vector<8x128xf32>
    %c2_i32 = arith.constant 2 : i32
    %53 = tpu.dynamic_rotate %52 by %c2_i32 dim 1 : vector<8x128xf32>, i32 -> vector<8x128xf32>
    %54 = vector.extract_strided_slice %51 {offsets = [8, 0], sizes = [8, 128], strides = [1, 1]} : vector<24x128xf32> to vector<8x128xf32>
    %55 = vector.extract_strided_slice %51 {offsets = [16, 0], sizes = [8, 128], strides = [1, 1]} : vector<24x128xf32> to vector<8x128xf32>
    %c126_i32 = arith.constant 126 : i32
    %56 = tpu.dynamic_rotate %55 by %c126_i32 dim 1 : vector<8x128xf32>, i32 -> vector<8x128xf32>
    %57 = arith.addf %53, %54 : vector<8x128xf32>
    %58 = arith.addf %57, %56 : vector<8x128xf32>
    %59 = vector.broadcast %48 : vector<8x1xf32> to vector<8x128xf32>
    %60 = arith.addf %58, %59 : vector<8x128xf32>
    %cst_23 = arith.constant 0.000000e+00 : f32
    %61 = vector.broadcast %cst_23 : f32 to vector<8x128xf32>
    %62 = arith.maximumf %60, %61 : vector<8x128xf32>
    %63 = vector.broadcast %1 : vector<1x128xf32> to vector<8x128xf32>
    %64 = arith.mulf %62, %63 : vector<8x128xf32>
    %cst_24 = arith.constant dense<0.000000e+00> : vector<24x128xf32>
    %65 = tpu.matmul %49, %64, %cst_24 {dimension_numbers = #tpu.dot_dimension_numbers<[1], [0], [0], [1], [0, 0, 1, 1], [], []>} : vector<24x8xf32>, vector<8x128xf32>, vector<24x128xf32> -> vector<24x128xf32>
    %66 = vector.extract_strided_slice %65 {offsets = [0, 0], sizes = [8, 128], strides = [1, 1]} : vector<24x128xf32> to vector<8x128xf32>
    %c2_i32_25 = arith.constant 2 : i32
    %67 = tpu.dynamic_rotate %66 by %c2_i32_25 dim 1 : vector<8x128xf32>, i32 -> vector<8x128xf32>
    %68 = vector.extract_strided_slice %65 {offsets = [8, 0], sizes = [8, 128], strides = [1, 1]} : vector<24x128xf32> to vector<8x128xf32>
    %69 = vector.extract_strided_slice %65 {offsets = [16, 0], sizes = [8, 128], strides = [1, 1]} : vector<24x128xf32> to vector<8x128xf32>
    %c126_i32_26 = arith.constant 126 : i32
    %70 = tpu.dynamic_rotate %69 by %c126_i32_26 dim 1 : vector<8x128xf32>, i32 -> vector<8x128xf32>
    %71 = arith.addf %67, %68 : vector<8x128xf32>
    %72 = arith.addf %71, %70 : vector<8x128xf32>
    %73 = vector.broadcast %50 : vector<8x1xf32> to vector<8x128xf32>
    %74 = arith.addf %72, %73 : vector<8x128xf32>
    %75 = arith.addf %74, %46 : vector<8x128xf32>
    %cst_27 = arith.constant 0.000000e+00 : f32
    %76 = vector.broadcast %cst_27 : f32 to vector<8x128xf32>
    %77 = arith.maximumf %75, %76 : vector<8x128xf32>
    %78 = vector.broadcast %1 : vector<1x128xf32> to vector<8x128xf32>
    %79 = arith.mulf %77, %78 : vector<8x128xf32>
    %c120 = arith.constant 120 : index
    %c0_28 = arith.constant 0 : index
    %80 = vector.load %arg2[%c120, %c0_28] : memref<224x25xf32, #tpu.memory_space<vmem>>, vector<24x8xf32>
    %c128 = arith.constant 128 : index
    %c24_29 = arith.constant 24 : index
    %81 = vector.load %arg2[%c128, %c24_29] : memref<224x25xf32, #tpu.memory_space<vmem>>, vector<8x1xf32>
    %c144 = arith.constant 144 : index
    %c0_30 = arith.constant 0 : index
    %82 = vector.load %arg2[%c144, %c0_30] : memref<224x25xf32, #tpu.memory_space<vmem>>, vector<24x8xf32>
    %c152 = arith.constant 152 : index
    %c24_31 = arith.constant 24 : index
    %83 = vector.load %arg2[%c152, %c24_31] : memref<224x25xf32, #tpu.memory_space<vmem>>, vector<8x1xf32>
    %cst_32 = arith.constant dense<0.000000e+00> : vector<24x128xf32>
    %84 = tpu.matmul %80, %79, %cst_32 {dimension_numbers = #tpu.dot_dimension_numbers<[1], [0], [0], [1], [0, 0, 1, 1], [], []>} : vector<24x8xf32>, vector<8x128xf32>, vector<24x128xf32> -> vector<24x128xf32>
    %85 = vector.extract_strided_slice %84 {offsets = [0, 0], sizes = [8, 128], strides = [1, 1]} : vector<24x128xf32> to vector<8x128xf32>
    %c4_i32 = arith.constant 4 : i32
    %86 = tpu.dynamic_rotate %85 by %c4_i32 dim 1 : vector<8x128xf32>, i32 -> vector<8x128xf32>
    %87 = vector.extract_strided_slice %84 {offsets = [8, 0], sizes = [8, 128], strides = [1, 1]} : vector<24x128xf32> to vector<8x128xf32>
    %88 = vector.extract_strided_slice %84 {offsets = [16, 0], sizes = [8, 128], strides = [1, 1]} : vector<24x128xf32> to vector<8x128xf32>
    %c124_i32 = arith.constant 124 : i32
    %89 = tpu.dynamic_rotate %88 by %c124_i32 dim 1 : vector<8x128xf32>, i32 -> vector<8x128xf32>
    %90 = arith.addf %86, %87 : vector<8x128xf32>
    %91 = arith.addf %90, %89 : vector<8x128xf32>
    %92 = vector.broadcast %81 : vector<8x1xf32> to vector<8x128xf32>
    %93 = arith.addf %91, %92 : vector<8x128xf32>
    %cst_33 = arith.constant 0.000000e+00 : f32
    %94 = vector.broadcast %cst_33 : f32 to vector<8x128xf32>
    %95 = arith.maximumf %93, %94 : vector<8x128xf32>
    %96 = vector.broadcast %1 : vector<1x128xf32> to vector<8x128xf32>
    %97 = arith.mulf %95, %96 : vector<8x128xf32>
    %cst_34 = arith.constant dense<0.000000e+00> : vector<24x128xf32>
    %98 = tpu.matmul %82, %97, %cst_34 {dimension_numbers = #tpu.dot_dimension_numbers<[1], [0], [0], [1], [0, 0, 1, 1], [], []>} : vector<24x8xf32>, vector<8x128xf32>, vector<24x128xf32> -> vector<24x128xf32>
    %99 = vector.extract_strided_slice %98 {offsets = [0, 0], sizes = [8, 128], strides = [1, 1]} : vector<24x128xf32> to vector<8x128xf32>
    %c4_i32_35 = arith.constant 4 : i32
    %100 = tpu.dynamic_rotate %99 by %c4_i32_35 dim 1 : vector<8x128xf32>, i32 -> vector<8x128xf32>
    %101 = vector.extract_strided_slice %98 {offsets = [8, 0], sizes = [8, 128], strides = [1, 1]} : vector<24x128xf32> to vector<8x128xf32>
    %102 = vector.extract_strided_slice %98 {offsets = [16, 0], sizes = [8, 128], strides = [1, 1]} : vector<24x128xf32> to vector<8x128xf32>
    %c124_i32_36 = arith.constant 124 : i32
    %103 = tpu.dynamic_rotate %102 by %c124_i32_36 dim 1 : vector<8x128xf32>, i32 -> vector<8x128xf32>
    %104 = arith.addf %100, %101 : vector<8x128xf32>
    %105 = arith.addf %104, %103 : vector<8x128xf32>
    %106 = vector.broadcast %83 : vector<8x1xf32> to vector<8x128xf32>
    %107 = arith.addf %105, %106 : vector<8x128xf32>
    %108 = arith.addf %107, %79 : vector<8x128xf32>
    %cst_37 = arith.constant 0.000000e+00 : f32
    %109 = vector.broadcast %cst_37 : f32 to vector<8x128xf32>
    %110 = arith.maximumf %108, %109 : vector<8x128xf32>
    %111 = vector.broadcast %1 : vector<1x128xf32> to vector<8x128xf32>
    %112 = arith.mulf %110, %111 : vector<8x128xf32>
    %c168 = arith.constant 168 : index
    %c0_38 = arith.constant 0 : index
    %113 = vector.load %arg2[%c168, %c0_38] : memref<224x25xf32, #tpu.memory_space<vmem>>, vector<24x8xf32>
    %c176 = arith.constant 176 : index
    %c24_39 = arith.constant 24 : index
    %114 = vector.load %arg2[%c176, %c24_39] : memref<224x25xf32, #tpu.memory_space<vmem>>, vector<8x1xf32>
    %c192 = arith.constant 192 : index
    %c0_40 = arith.constant 0 : index
    %115 = vector.load %arg2[%c192, %c0_40] : memref<224x25xf32, #tpu.memory_space<vmem>>, vector<24x8xf32>
    %c200 = arith.constant 200 : index
    %c24_41 = arith.constant 24 : index
    %116 = vector.load %arg2[%c200, %c24_41] : memref<224x25xf32, #tpu.memory_space<vmem>>, vector<8x1xf32>
    %cst_42 = arith.constant dense<0.000000e+00> : vector<24x128xf32>
    %117 = tpu.matmul %113, %112, %cst_42 {dimension_numbers = #tpu.dot_dimension_numbers<[1], [0], [0], [1], [0, 0, 1, 1], [], []>} : vector<24x8xf32>, vector<8x128xf32>, vector<24x128xf32> -> vector<24x128xf32>
    %118 = vector.extract_strided_slice %117 {offsets = [0, 0], sizes = [8, 128], strides = [1, 1]} : vector<24x128xf32> to vector<8x128xf32>
    %c8_i32 = arith.constant 8 : i32
    %119 = tpu.dynamic_rotate %118 by %c8_i32 dim 1 : vector<8x128xf32>, i32 -> vector<8x128xf32>
    %120 = vector.extract_strided_slice %117 {offsets = [8, 0], sizes = [8, 128], strides = [1, 1]} : vector<24x128xf32> to vector<8x128xf32>
    %121 = vector.extract_strided_slice %117 {offsets = [16, 0], sizes = [8, 128], strides = [1, 1]} : vector<24x128xf32> to vector<8x128xf32>
    %c120_i32 = arith.constant 120 : i32
    %122 = tpu.dynamic_rotate %121 by %c120_i32 dim 1 : vector<8x128xf32>, i32 -> vector<8x128xf32>
    %123 = arith.addf %119, %120 : vector<8x128xf32>
    %124 = arith.addf %123, %122 : vector<8x128xf32>
    %125 = vector.broadcast %114 : vector<8x1xf32> to vector<8x128xf32>
    %126 = arith.addf %124, %125 : vector<8x128xf32>
    %cst_43 = arith.constant 0.000000e+00 : f32
    %127 = vector.broadcast %cst_43 : f32 to vector<8x128xf32>
    %128 = arith.maximumf %126, %127 : vector<8x128xf32>
    %129 = vector.broadcast %1 : vector<1x128xf32> to vector<8x128xf32>
    %130 = arith.mulf %128, %129 : vector<8x128xf32>
    %cst_44 = arith.constant dense<0.000000e+00> : vector<24x128xf32>
    %131 = tpu.matmul %115, %130, %cst_44 {dimension_numbers = #tpu.dot_dimension_numbers<[1], [0], [0], [1], [0, 0, 1, 1], [], []>} : vector<24x8xf32>, vector<8x128xf32>, vector<24x128xf32> -> vector<24x128xf32>
    %132 = vector.extract_strided_slice %131 {offsets = [0, 0], sizes = [8, 128], strides = [1, 1]} : vector<24x128xf32> to vector<8x128xf32>
    %c8_i32_45 = arith.constant 8 : i32
    %133 = tpu.dynamic_rotate %132 by %c8_i32_45 dim 1 : vector<8x128xf32>, i32 -> vector<8x128xf32>
    %134 = vector.extract_strided_slice %131 {offsets = [8, 0], sizes = [8, 128], strides = [1, 1]} : vector<24x128xf32> to vector<8x128xf32>
    %135 = vector.extract_strided_slice %131 {offsets = [16, 0], sizes = [8, 128], strides = [1, 1]} : vector<24x128xf32> to vector<8x128xf32>
    %c120_i32_46 = arith.constant 120 : i32
    %136 = tpu.dynamic_rotate %135 by %c120_i32_46 dim 1 : vector<8x128xf32>, i32 -> vector<8x128xf32>
    %137 = arith.addf %133, %134 : vector<8x128xf32>
    %138 = arith.addf %137, %136 : vector<8x128xf32>
    %139 = vector.broadcast %116 : vector<8x1xf32> to vector<8x128xf32>
    %140 = arith.addf %138, %139 : vector<8x128xf32>
    %141 = arith.addf %140, %112 : vector<8x128xf32>
    %cst_47 = arith.constant 0.000000e+00 : f32
    %142 = vector.broadcast %cst_47 : f32 to vector<8x128xf32>
    %143 = arith.maximumf %141, %142 : vector<8x128xf32>
    %144 = vector.broadcast %1 : vector<1x128xf32> to vector<8x128xf32>
    %145 = arith.mulf %143, %144 : vector<8x128xf32>
    %c0_48 = arith.constant 0 : index
    %c0_49 = arith.constant 0 : index
    %146 = vector.load %arg1[%c0_48, %c0_49] : memref<128x128xf32, #tpu.memory_space<vmem>>, vector<128x128xf32>
    %cst_50 = arith.constant dense<0.000000e+00> : vector<8x128xf32>
    %147 = tpu.matmul %145, %146, %cst_50 {dimension_numbers = #tpu.dot_dimension_numbers<[1], [0], [0], [1], [0, 0, 1, 1], [], []>} : vector<8x128xf32>, vector<128x128xf32>, vector<8x128xf32> -> vector<8x128xf32>
    %c216 = arith.constant 216 : index
    %c0_51 = arith.constant 0 : index
    %148 = vector.load %arg2[%c216, %c0_51] : memref<224x25xf32, #tpu.memory_space<vmem>>, vector<8x8xf32>
    %c216_52 = arith.constant 216 : index
    %c24_53 = arith.constant 24 : index
    %149 = vector.load %arg2[%c216_52, %c24_53] : memref<224x25xf32, #tpu.memory_space<vmem>>, vector<8x1xf32>
    %cst_54 = arith.constant dense<0.000000e+00> : vector<8x128xf32>
    %150 = tpu.matmul %148, %147, %cst_54 {dimension_numbers = #tpu.dot_dimension_numbers<[1], [0], [0], [1], [0, 0, 1, 1], [], []>} : vector<8x8xf32>, vector<8x128xf32>, vector<8x128xf32> -> vector<8x128xf32>
    %151 = vector.broadcast %149 : vector<8x1xf32> to vector<8x128xf32>
    %152 = arith.addf %150, %151 : vector<8x128xf32>
    %c0_55 = arith.constant 0 : index
    %c0_56 = arith.constant 0 : index
    %153 = vector.load %arg3[%c0_55, %c0_56] : memref<8x128xf32, #tpu.memory_space<vmem>>, vector<8x128xf32>
    tpu.vector_store %arg3[%c0_55, %c0_56], %152 {strides = array<i32>} : memref<8x128xf32, #tpu.memory_space<vmem>>, vector<8x128xf32>,
    return
  }
}

</mosaic_0001>

<llo_original>
// kernel: tcn_forward.1
$region0: #{tcn_forward.1}
  #allocation0 [shape = 'u32[]', space=smem, size = 0x4, offset = 0x4, fixed_abs, tag = 'smem constant byte address 0x4 - core index']
  #allocation1 [shape = 'u32[144,128]{1,0:T(1,128)}', space=vmem, size = 0x12000, scoped, tag = 'internal scratch']
  %s0 = inlined_call_operand.vmem [shape: f32[25,128], index: 0, kind: input, shape index: {}]
  %s1 = inlined_call_operand.vmem [shape: f32[128,128], index: 1, kind: input, shape index: {}]
  %s2 = inlined_call_operand.vmem [shape: f32[224,25], index: 2, kind: input, shape index: {}]
  %s3 = inlined_call_operand.vmem [shape: f32[8,128], index: 3, kind: output, shape index: {}]
  %s4 = sld [smem:[#allocation0]]
  $region22: #{tcn_forward.1} parent=0
    _
  %s6 = ssub.s32 1, %s4
  %s7 = scalar_select 0, %s6, %s4
  // Predicated region
  $region2: #{tcn_forward.1} parent=0 // pred_check
    _
  $region3: #{tcn_forward.1} parent=0 // pred_check_branch
    %9 = sbr.rel (0) target = $region5
  $region4: #{tcn_forward.1} parent=0 // pred_region
    _
  $region5: #{tcn_forward.1} parent=0 // pred_fallthru
    _
  // Predicated region
  $region6: #{tcn_forward.1} parent=0 // pred_check
    _
  $region7: #{tcn_forward.1} parent=0 // pred_check_branch
    %11 = sbr.rel (0) target = $region9
  $region8: #{tcn_forward.1} parent=0 // pred_region
    _
  $region9: #{tcn_forward.1} parent=0 // pred_fallthru
    _
  // Predicated region
  $region10: #{tcn_forward.1} parent=0 // pred_check
    _
  $region11: #{tcn_forward.1} parent=0 // pred_check_branch
    %13 = sbr.rel (0) target = $region13
  $region12: #{tcn_forward.1} parent=0 // pred_region
    _
  $region13: #{tcn_forward.1} parent=0 // pred_fallthru
    _
  %v14 = vld [vmem:[%s0] sm:$0xff]
  %v15 = vld [vmem:[%s0 + $0x8] sm:$0xff]
  %v16 = vld [vmem:[%s0 + $0x10] sm:$0xff]
  %v17 = vld [vmem:[%s0 + $0x18] sm:$0x1]
  %v18 = vld [vmem:[%s2] sm:$0xff]
  %v19 = vld [vmem:[%s2 + $0x8] sm:$0xff]
  %v20 = vld [vmem:[%s2 + $0x10] sm:$0xff]
  %v21 = vld [vmem:[%s2 + $0x30] sm:$0xff]
  %v22 = vld [vmem:[%s2 + $0x38] sm:$0xff]
  %v23 = vld [vmem:[%s2 + $0x40] sm:$0xff]
  %v24 = vld [vmem:[%s2 + $0x18] sm:$0xff]
  %v25 = vld [vmem:[%s2 + $0x20] sm:$0xff]
  %v26 = vld [vmem:[%s2 + $0x28] sm:$0xff]
  %vm27 = vcmask 195584
  %v29 = vsel %vm27, %v18, 0
  %v32 = vsel %vm27, %v19, 0
  %v35 = vsel %vm27, %v20, 0
  %37 = vmatprep.subr.mxu0 0.0
  %38 = vmatpush1.msra.mxu0 %v14
  %39 = vmatprep.subr.mxu0 0.0
  %40 = vmatpush1.msra.mxu0 %v15
  %41 = vmatprep.subr.mxu0 0.0
  %42 = vmatpush1.msra.mxu0 %v16
  %43 = vmatprep.subr.mxu0 0.0
  %44 = vmatpush1.msra.mxu0 0.0
  %45 = vmatprep.subr.mxu0 0.0
  %46 = vmatpush1.msra.mxu0 0.0
  %47 = vmatprep.subr.mxu0 0.0
  %48 = vmatpush1.msra.mxu0 0.0
  %49 = vmatprep.subr.mxu0 0.0
  %50 = vmatpush1.msra.mxu0 0.0
  %51 = vmatprep.subr.mxu0 0.0
  %52 = vmatpush1.msra.mxu0 0.0
  %53 = vmatprep.subr.mxu0 0.0
  %54 = vmatpush1.msra.mxu0 0.0
  %55 = vmatprep.subr.mxu0 0.0
  %56 = vmatpush1.msra.mxu0 0.0
  %57 = vmatprep.subr.mxu0 0.0
  %58 = vmatpush1.msra.mxu0 0.0
  %59 = vmatprep.subr.mxu0 0.0
  %60 = vmatpush1.msra.mxu0 0.0
  %61 = vmatprep.subr.mxu0 0.0
  %62 = vmatpush1.msra.mxu0 0.0
  %63 = vmatprep.subr.mxu0 0.0
  %64 = vmatpush1.msra.mxu0 0.0
  %65 = vmatprep.subr.mxu0 0.0
  %66 = vmatpush1.msra.mxu0 0.0
  %67 = vmatprep.subr.mxu0 0.0
  %68 = vmatpush1.msra.mxu0 0.0
  %69 = vmatprep.subr.mxu0 0.0
  %70 = vmatpush1.msra.mxu0 0.0
  %71 = vmatprep.subr.mxu0 0.0
  %72 = vmatpush1.msra.mxu0 0.0
  %73 = vmatprep.subr.mxu0 0.0
  %74 = vmatpush1.msra.mxu0 0.0
  %75 = vmatprep.subr.mxu0 0.0
  %76 = vmatpush1.msra.mxu0 0.0
  %77 = vmatprep.subr.mxu0 0.0
  %78 = vmatpush1.msra.mxu0 0.0
  %79 = vmatprep.subr.mxu0 0.0
  %80 = vmatpush1.msra.mxu0 0.0
  %81 = vmatprep.subr.mxu0 0.0
  %82 = vmatpush1.msra.mxu0 0.0
  %83 = vmatprep.subr.mxu0 0.0
  %84 = vmatpush1.msra.mxu0 0.0
  %85 = vmatprep.subr.mxu0 0.0
  %86 = vmatpush1.msra.mxu0 0.0
  %87 = vmatprep.subr.mxu0 0.0
  %88 = vmatpush1.msra.mxu0 0.0
  %89 = vmatprep.subr.mxu0 0.0
  %90 = vmatpush1.msra.mxu0 0.0
  %91 = vmatprep.subr.mxu0 0.0
  %92 = vmatpush1.msra.mxu0 0.0
  %93 = vmatprep.subr.mxu0 0.0
  %94 = vmatpush1.msra.mxu0 0.0
  %95 = vmatprep.subr.mxu0 0.0
  %96 = vmatpush1.msra.mxu0 0.0
  %97 = vmatprep.subr.mxu0 0.0
  %98 = vmatpush1.msra.mxu0 0.0
  %99 = vmatprep.subr.mxu0 0.0
  %100 = vmatpush1.msra.mxu0 0.0
  %101 = vmatprep.mubr.f32.mxu0 0.0
  %102 = vmatmul.mubr.f32.gmra.mrb[0].mxu0 %v29
  %v103 = vpop.f32.mrb[0].mxu0
  %v104 = vadd.f32 0.0, %v103
  %v105 = vpop.f32.mrb[0].mxu0
  %106 = vmatprep.mubr.f32.mxu0 0.0
  %107 = vmatmul.mubr.f32.gmra.mrb[0].mxu0 %v32
  %v108 = vpop.f32.mrb[0].mxu0
  %v109 = vadd.f32 0.0, %v108
  %v110 = vpop.f32.mrb[0].mxu0
  %111 = vmatprep.mubr.f32.mxu0 0.0
  %112 = vmatmul.mubr.f32.gmra.mrb[0].mxu0 %v35
  %v113 = vpop.f32.mrb[0].mxu0
  %v114 = vadd.f32 0.0, %v113
  %v115 = vpop.f32.mrb[0].mxu0
  %116 = vdwg.mxu0
  %117 = vrot.lane.b32.xlu0 %v104, 1
  %v118 = vpop.permute.xlu0 %117
  %119 = vrot.lane.b32.xlu0 %v114, 127
  %v120 = vpop.permute.xlu0 %119
  %v121 = vadd.f32 %v118, %v109
  %v122 = vadd.f32 %v121, %v120
  %123 = vset.pattern.permute.xlu0 24
  %124 = vperm.xlu0 %123, %v19
  %v125 = vpop.permute.xlu0 %124
  %v127 = vadd.f32 %v122, %v125
  %v128 = vmax.f32 %v127, 0.0
  %v129 = vlaneseq
  %v130 = vshrl.u32 %v129, 7
  %v131 = vsub.s32 0, %v130
  %v132 = vrot.slane %v17, %v131
  %v133 = vmul.f32 %v128, %v132
  %vm134 = vcmask 64512
  %v136 = vsel %vm134, %v21, 0
  %v139 = vsel %vm134, %v22, 0
  %v142 = vsel %vm134, %v23, 0
  %144 = vmatprep.subr.mxu0 0.0
  %145 = vmatpush1.msra.mxu0 %v133
  %146 = vmatprep.subr.mxu0 0.0
  %147 = vmatpush1.msra.mxu0 0.0
  %148 = vmatprep.subr.mxu0 0.0
  %149 = vmatpush1.msra.mxu0 0.0
  %150 = vmatprep.subr.mxu0 0.0
  %151 = vmatpush1.msra.mxu0 0.0
  %152 = vmatprep.subr.mxu0 0.0
  %153 = vmatpush1.msra.mxu0 0.0
  %154 = vmatprep.subr.mxu0 0.0
  %155 = vmatpush1.msra.mxu0 0.0
  %156 = vmatprep.subr.mxu0 0.0
  %157 = vmatpush1.msra.mxu0 0.0
  %158 = vmatprep.subr.mxu0 0.0
  %159 = vmatpush1.msra.mxu0 0.0
  %160 = vmatprep.subr.mxu0 0.0
  %161 = vmatpush1.msra.mxu0 0.0
  %162 = vmatprep.subr.mxu0 0.0
  %163 = vmatpush1.msra.mxu0 0.0
  %164 = vmatprep.subr.mxu0 0.0
  %165 = vmatpush1.msra.mxu0 0.0
  %166 = vmatprep.subr.mxu0 0.0
  %167 = vmatpush1.msra.mxu0 0.0
  %168 = vmatprep.subr.mxu0 0.0
  %169 = vmatpush1.msra.mxu0 0.0
  %170 = vmatprep.subr.mxu0 0.0
  %171 = vmatpush1.msra.mxu0 0.0
  %172 = vmatprep.subr.mxu0 0.0
  %173 = vmatpush1.msra.mxu0 0.0
  %174 = vmatprep.subr.mxu0 0.0
  %175 = vmatpush1.msra.mxu0 0.0
  %176 = vmatprep.subr.mxu0 0.0
  %177 = vmatpush1.msra.mxu0 0.0
  %178 = vmatprep.subr.mxu0 0.0
  %179 = vmatpush1.msra.mxu0 0.0
  %180 = vmatprep.subr.mxu0 0.0
  %181 = vmatpush1.msra.mxu0 0.0
  %182 = vmatprep.subr.mxu0 0.0
  %183 = vmatpush1.msra.mxu0 0.0
  %184 = vmatprep.subr.mxu0 0.0
  %185 = vmatpush1.msra.mxu0 0.0
  %186 = vmatprep.subr.mxu0 0.0
  %187 = vmatpush1.msra.mxu0 0.0
  %188 = vmatprep.subr.mxu0 0.0
  %189 = vmatpush1.msra.mxu0 0.0
  %190 = vmatprep.subr.mxu0 0.0
  %191 = vmatpush1.msra.mxu0 0.0
  %192 = vmatprep.subr.mxu0 0.0
  %193 = vmatpush1.msra.mxu0 0.0
  %194 = vmatprep.subr.mxu0 0.0
  %195 = vmatpush1.msra.mxu0 0.0
  %196 = vmatprep.subr.mxu0 0.0
  %197 = vmatpush1.msra.mxu0 0.0
  %198 = vmatprep.subr.mxu0 0.0
  %199 = vmatpush1.msra.mxu0 0.0
  %200 = vmatprep.subr.mxu0 0.0
  %201 = vmatpush1.msra.mxu0 0.0
  %202 = vmatprep.subr.mxu0 0.0
  %203 = vmatpush1.msra.mxu0 0.0
  %204 = vmatprep.subr.mxu0 0.0
  %205 = vmatpush1.msra.mxu0 0.0
  %206 = vmatprep.subr.mxu0 0.0
  %207 = vmatpush1.msra.mxu0 0.0
  %208 = vmatprep.mubr.f32.mxu0 0.0
  %209 = vmatmul.mubr.f32.gmra.mrb[0].mxu0 %v136
  %v210 = vpop.f32.mrb[0].mxu0
  %v211 = vadd.f32 0.0, %v210
  %v212 = vpop.f32.mrb[0].mxu0
  %213 = vmatprep.mubr.f32.mxu0 0.0
  %214 = vmatmul.mubr.f32.gmra.mrb[0].mxu0 %v139
  %v215 = vpop.f32.mrb[0].mxu0
  %v216 = vadd.f32 0.0, %v215
  %v217 = vpop.f32.mrb[0].mxu0
  %218 = vmatprep.mubr.f32.mxu0 0.0
  %219 = vmatmul.mubr.f32.gmra.mrb[0].mxu0 %v142
  %v220 = vpop.f32.mrb[0].mxu0
  %v221 = vadd.f32 0.0, %v220
  %v222 = vpop.f32.mrb[0].mxu0
  %223 = vdwg.mxu0
  %224 = vrot.lane.b32.xlu0 %v211, 1
  %v225 = vpop.permute.xlu0 %224
  %226 = vrot.lane.b32.xlu0 %v221, 127
  %v227 = vpop.permute.xlu0 %226
  %v228 = vadd.f32 %v225, %v216
  %v229 = vadd.f32 %v228, %v227
  %230 = vset.pattern.permute.xlu0 24
  %231 = vperm.xlu0 %230, %v22
  %v232 = vpop.permute.xlu0 %231
  %v234 = vadd.f32 %v229, %v232
  %v236 = vsel %vm27, %v24, 0
  %v239 = vsel %vm27, %v25, 0
  %v242 = vsel %vm27, %v26, 0
  %244 = vmatprep.subr.mxu0 0.0
  %245 = vmatpush1.msra.mxu0 %v14
  %246 = vmatprep.subr.mxu0 0.0
  %247 = vmatpush1.msra.mxu0 %v15
  %248 = vmatprep.subr.mxu0 0.0
  %249 = vmatpush1.msra.mxu0 %v16
  %250 = vmatprep.subr.mxu0 0.0
  %251 = vmatpush1.msra.mxu0 0.0
  %252 = vmatprep.subr.mxu0 0.0
  %253 = vmatpush1.msra.mxu0 0.0
  %254 = vmatprep.subr.mxu0 0.0
  %255 = vmatpush1.msra.mxu0 0.0
  %256 = vmatprep.subr.mxu0 0.0
  %257 = vmatpush1.msra.mxu0 0.0
  %258 = vmatprep.subr.mxu0 0.0
  %259 = vmatpush1.msra.mxu0 0.0
  %260 = vmatprep.subr.mxu0 0.0
  %261 = vmatpush1.msra.mxu0 0.0
  %262 = vmatprep.subr.mxu0 0.0
  %263 = vmatpush1.msra.mxu0 0.0
  %264 = vmatprep.subr.mxu0 0.0
  %265 = vmatpush1.msra.mxu0 0.0
  %266 = vmatprep.subr.mxu0 0.0
  %267 = vmatpush1.msra.mxu0 0.0
  %268 = vmatprep.subr.mxu0 0.0
  %269 = vmatpush1.msra.mxu0 0.0
  %270 = vmatprep.subr.mxu0 0.0
  %271 = vmatpush1.msra.mxu0 0.0
  %272 = vmatprep.subr.mxu0 0.0
  %273 = vmatpush1.msra.mxu0 0.0
  %274 = vmatprep.subr.mxu0 0.0
  %275 = vmatpush1.msra.mxu0 0.0
  %276 = vmatprep.subr.mxu0 0.0
  %277 = vmatpush1.msra.mxu0 0.0
  %278 = vmatprep.subr.mxu0 0.0
  %279 = vmatpush1.msra.mxu0 0.0
  %280 = vmatprep.subr.mxu0 0.0
  %281 = vmatpush1.msra.mxu0 0.0
  %282 = vmatprep.subr.mxu0 0.0
  %283 = vmatpush1.msra.mxu0 0.0
  %284 = vmatprep.subr.mxu0 0.0
  %285 = vmatpush1.msra.mxu0 0.0
  %286 = vmatprep.subr.mxu0 0.0
  %287 = vmatpush1.msra.mxu0 0.0
  %288 = vmatprep.subr.mxu0 0.0
  %289 = vmatpush1.msra.mxu0 0.0
  %290 = vmatprep.subr.mxu0 0.0
  %291 = vmatpush1.msra.mxu0 0.0
  %292 = vmatprep.subr.mxu0 0.0
  %293 = vmatpush1.msra.mxu0 0.0
  %294 = vmatprep.subr.mxu0 0.0
  %295 = vmatpush1.msra.mxu0 0.0
  %296 = vmatprep.subr.mxu0 0.0
  %297 = vmatpush1.msra.mxu0 0.0
  %298 = vmatprep.subr.mxu0 0.0
  %299 = vmatpush1.msra.mxu0 0.0
  %300 = vmatprep.subr.mxu0 0.0
  %301 = vmatpush1.msra.mxu0 0.0
  %302 = vmatprep.subr.mxu0 0.0
  %303 = vmatpush1.msra.mxu0 0.0
  %304 = vmatprep.subr.mxu0 0.0
  %305 = vmatpush1.msra.mxu0 0.0
  %306 = vmatprep.subr.mxu0 0.0
  %307 = vmatpush1.msra.mxu0 0.0
  %308 = vmatprep.mubr.f32.mxu0 0.0
  %309 = vmatmul.mubr.f32.gmra.mrb[0].mxu0 %v236
  %v310 = vpop.f32.mrb[0].mxu0
  %v311 = vadd.f32 0.0, %v310
  %v312 = vpop.f32.mrb[0].mxu0
  %313 = vmatprep.mubr.f32.mxu0 0.0
  %314 = vmatmul.mubr.f32.gmra.mrb[0].mxu0 %v239
  %v315 = vpop.f32.mrb[0].mxu0
  %v316 = vadd.f32 0.0, %v315
  %v317 = vpop.f32.mrb[0].mxu0
  %318 = vmatprep.mubr.f32.mxu0 0.0
  %319 = vmatmul.mubr.f32.gmra.mrb[0].mxu0 %v242
  %v320 = vpop.f32.mrb[0].mxu0
  %v321 = vadd.f32 0.0, %v320
  %v322 = vpop.f32.mrb[0].mxu0
  %323 = vdwg.mxu0
  %324 = vrot.lane.b32.xlu0 %v311, 1
  %v325 = vpop.permute.xlu0 %324
  %326 = vrot.lane.b32.xlu0 %v321, 127
  %v327 = vpop.permute.xlu0 %326
  %v328 = vadd.f32 %v325, %v316
  %v329 = vadd.f32 %v328, %v327
  %330 = vset.pattern.permute.xlu0 24
  %331 = vperm.xlu0 %330, %v25
  %v332 = vpop.permute.xlu0 %331
  %v334 = vadd.f32 %v329, %v332
  %v335 = vadd.f32 %v234, %v334
  %v336 = vmax.f32 %v335, 0.0
  %v337 = vmul.f32 %v336, %v132
  %v338 = vld [vmem:[%s2 + $0x48] sm:$0xff]
  %v339 = vld [vmem:[%s2 + $0x50] sm:$0xff]
  %v340 = vld [vmem:[%s2 + $0x58] sm:$0xff]
  %v341 = vld [vmem:[%s2 + $0x60] sm:$0xff]
  %v342 = vld [vmem:[%s2 + $0x68] sm:$0xff]
  %v343 = vld [vmem:[%s2 + $0x70] sm:$0xff]
  %v345 = vsel %vm134, %v338, 0
  %v348 = vsel %vm134, %v339, 0
  %v351 = vsel %vm134, %v340, 0
  %353 = vmatprep.subr.mxu0 0.0
  %354 = vmatpush1.msra.mxu0 %v337
  %355 = vmatprep.subr.mxu0 0.0
  %356 = vmatpush1.msra.mxu0 0.0
  %357 = vmatprep.subr.mxu0 0.0
  %358 = vmatpush1.msra.mxu0 0.0
  %359 = vmatprep.subr.mxu0 0.0
  %360 = vmatpush1.msra.mxu0 0.0
  %361 = vmatprep.subr.mxu0 0.0
  %362 = vmatpush1.msra.mxu0 0.0
  %363 = vmatprep.subr.mxu0 0.0
  %364 = vmatpush1.msra.mxu0 0.0
  %365 = vmatprep.subr.mxu0 0.0
  %366 = vmatpush1.msra.mxu0 0.0
  %367 = vmatprep.subr.mxu0 0.0
  %368 = vmatpush1.msra.mxu0 0.0
  %369 = vmatprep.subr.mxu0 0.0
  %370 = vmatpush1.msra.mxu0 0.0
  %371 = vmatprep.subr.mxu0 0.0
  %372 = vmatpush1.msra.mxu0 0.0
  %373 = vmatprep.subr.mxu0 0.0
  %374 = vmatpush1.msra.mxu0 0.0
  %375 = vmatprep.subr.mxu0 0.0
  %376 = vmatpush1.msra.mxu0 0.0
  %377 = vmatprep.subr.mxu0 0.0
  %378 = vmatpush1.msra.mxu0 0.0
  %379 = vmatprep.subr.mxu0 0.0
  %380 = vmatpush1.msra.mxu0 0.0
  %381 = vmatprep.subr.mxu0 0.0
  %382 = vmatpush1.msra.mxu0 0.0
  %383 = vmatprep.subr.mxu0 0.0
  %384 = vmatpush1.msra.mxu0 0.0
  %385 = vmatprep.subr.mxu0 0.0
  %386 = vmatpush1.msra.mxu0 0.0
  %387 = vmatprep.subr.mxu0 0.0
  %388 = vmatpush1.msra.mxu0 0.0
  %389 = vmatprep.subr.mxu0 0.0
  %390 = vmatpush1.msra.mxu0 0.0
  %391 = vmatprep.subr.mxu0 0.0
  %392 = vmatpush1.msra.mxu0 0.0
  %393 = vmatprep.subr.mxu0 0.0
  %394 = vmatpush1.msra.mxu0 0.0
  %395 = vmatprep.subr.mxu0 0.0
  %396 = vmatpush1.msra.mxu0 0.0
  %397 = vmatprep.subr.mxu0 0.0
  %398 = vmatpush1.msra.mxu0 0.0
  %399 = vmatprep.subr.mxu0 0.0
  %400 = vmatpush1.msra.mxu0 0.0
  %401 = vmatprep.subr.mxu0 0.0
  %402 = vmatpush1.msra.mxu0 0.0
  %403 = vmatprep.subr.mxu0 0.0
  %404 = vmatpush1.msra.mxu0 0.0
  %405 = vmatprep.subr.mxu0 0.0
  %406 = vmatpush1.msra.mxu0 0.0
  %407 = vmatprep.subr.mxu0 0.0
  %408 = vmatpush1.msra.mxu0 0.0
  %409 = vmatprep.subr.mxu0 0.0
  %410 = vmatpush1.msra.mxu0 0.0
  %411 = vmatprep.subr.mxu0 0.0
  %412 = vmatpush1.msra.mxu0 0.0
  %413 = vmatprep.subr.mxu0 0.0
  %414 = vmatpush1.msra.mxu0 0.0
  %415 = vmatprep.subr.mxu0 0.0
  %416 = vmatpush1.msra.mxu0 0.0
  %417 = vmatprep.mubr.f32.mxu0 0.0
  %418 = vmatmul.mubr.f32.gmra.mrb[0].mxu0 %v345
  %v419 = vpop.f32.mrb[0].mxu0
  %v420 = vadd.f32 0.0, %v419
  %v421 = vpop.f32.mrb[0].mxu0
  %422 = vmatprep.mubr.f32.mxu0 0.0
  %423 = vmatmul.mubr.f32.gmra.mrb[0].mxu0 %v348
  %v424 = vpop.f32.mrb[0].mxu0
  %v425 = vadd.f32 0.0, %v424
  %v426 = vpop.f32.mrb[0].mxu0
  %427 = vmatprep.mubr.f32.mxu0 0.0
  %428 = vmatmul.mubr.f32.gmra.mrb[0].mxu0 %v351
  %v429 = vpop.f32.mrb[0].mxu0
  %v430 = vadd.f32 0.0, %v429
  %v431 = vpop.f32.mrb[0].mxu0
  %432 = vdwg.mxu0
  %433 = vrot.lane.b32.xlu0 %v420, 2
  %v434 = vpop.permute.xlu0 %433
  %435 = vrot.lane.b32.xlu0 %v430, 126
  %v436 = vpop.permute.xlu0 %435
  %v437 = vadd.f32 %v434, %v425
  %v438 = vadd.f32 %v437, %v436
  %439 = vset.pattern.permute.xlu0 24
  %440 = vperm.xlu0 %439, %v339
  %v441 = vpop.permute.xlu0 %440
  %v443 = vadd.f32 %v438, %v441
  %v444 = vmax.f32 %v443, 0.0
  %v445 = vmul.f32 %v444, %v132
  %v447 = vsel %vm134, %v341, 0
  %v450 = vsel %vm134, %v342, 0
  %v453 = vsel %vm134, %v343, 0
  %455 = vmatprep.subr.mxu0 0.0
  %456 = vmatpush1.msra.mxu0 %v445
  %457 = vmatprep.subr.mxu0 0.0
  %458 = vmatpush1.msra.mxu0 0.0
  %459 = vmatprep.subr.mxu0 0.0
  %460 = vmatpush1.msra.mxu0 0.0
  %461 = vmatprep.subr.mxu0 0.0
  %462 = vmatpush1.msra.mxu0 0.0
  %463 = vmatprep.subr.mxu0 0.0
  %464 = vmatpush1.msra.mxu0 0.0
  %465 = vmatprep.subr.mxu0 0.0
  %466 = vmatpush1.msra.mxu0 0.0
  %467 = vmatprep.subr.mxu0 0.0
  %468 = vmatpush1.msra.mxu0 0.0
  %469 = vmatprep.subr.mxu0 0.0
  %470 = vmatpush1.msra.mxu0 0.0
  %471 = vmatprep.subr.mxu0 0.0
  %472 = vmatpush1.msra.mxu0 0.0
  %473 = vmatprep.subr.mxu0 0.0
  %474 = vmatpush1.msra.mxu0 0.0
  %475 = vmatprep.subr.mxu0 0.0
  %476 = vmatpush1.msra.mxu0 0.0
  %477 = vmatprep.subr.mxu0 0.0
  %478 = vmatpush1.msra.mxu0 0.0
  %479 = vmatprep.subr.mxu0 0.0
  %480 = vmatpush1.msra.mxu0 0.0
  %481 = vmatprep.subr.mxu0 0.0
  %482 = vmatpush1.msra.mxu0 0.0
  %483 = vmatprep.subr.mxu0 0.0
  %484 = vmatpush1.msra.mxu0 0.0
  %485 = vmatprep.subr.mxu0 0.0
  %486 = vmatpush1.msra.mxu0 0.0
  %487 = vmatprep.subr.mxu0 0.0
  %488 = vmatpush1.msra.mxu0 0.0
  %489 = vmatprep.subr.mxu0 0.0
  %490 = vmatpush1.msra.mxu0 0.0
  %491 = vmatprep.subr.mxu0 0.0
  %492 = vmatpush1.msra.mxu0 0.0
  %493 = vmatprep.subr.mxu0 0.0
  %494 = vmatpush1.msra.mxu0 0.0
  %495 = vmatprep.subr.mxu0 0.0
  %496 = vmatpush1.msra.mxu0 0.0
  %497 = vmatprep.subr.mxu0 0.0
  %498 = vmatpush1.msra.mxu0 0.0
  %499 = vmatprep.subr.mxu0 0.0
  %500 = vmatpush1.msra.mxu0 0.0
  %501 = vmatprep.subr.mxu0 0.0
  %502 = vmatpush1.msra.mxu0 0.0
  %503 = vmatprep.subr.mxu0 0.0
  %504 = vmatpush1.msra.mxu0 0.0
  %505 = vmatprep.subr.mxu0 0.0
  %506 = vmatpush1.msra.mxu0 0.0
  %507 = vmatprep.subr.mxu0 0.0
  %508 = vmatpush1.msra.mxu0 0.0
  %509 = vmatprep.subr.mxu0 0.0
  %510 = vmatpush1.msra.mxu0 0.0
  %511 = vmatprep.subr.mxu0 0.0
  %512 = vmatpush1.msra.mxu0 0.0
  %513 = vmatprep.subr.mxu0 0.0
  %514 = vmatpush1.msra.mxu0 0.0
  %515 = vmatprep.subr.mxu0 0.0
  %516 = vmatpush1.msra.mxu0 0.0
  %517 = vmatprep.subr.mxu0 0.0
  %518 = vmatpush1.msra.mxu0 0.0
  %519 = vmatprep.mubr.f32.mxu0 0.0
  %520 = vmatmul.mubr.f32.gmra.mrb[0].mxu0 %v447
  %v521 = vpop.f32.mrb[0].mxu0
  %v522 = vadd.f32 0.0, %v521
  %v523 = vpop.f32.mrb[0].mxu0
  %524 = vmatprep.mubr.f32.mxu0 0.0
  %525 = vmatmul.mubr.f32.gmra.mrb[0].mxu0 %v450
  %v526 = vpop.f32.mrb[0].mxu0
  %v527 = vadd.f32 0.0, %v526
  %v528 = vpop.f32.mrb[0].mxu0
  %529 = vmatprep.mubr.f32.mxu0 0.0
  %530 = vmatmul.mubr.f32.gmra.mrb[0].mxu0 %v453
  %v531 = vpop.f32.mrb[0].mxu0
  %v532 = vadd.f32 0.0, %v531
  %v533 = vpop.f32.mrb[0].mxu0
  %534 = vdwg.mxu0
  %535 = vrot.lane.b32.xlu0 %v522, 2
  %v536 = vpop.permute.xlu0 %535
  %537 = vrot.lane.b32.xlu0 %v532, 126
  %v538 = vpop.permute.xlu0 %537
  %v539 = vadd.f32 %v536, %v527
  %v540 = vadd.f32 %v539, %v538
  %541 = vset.pattern.permute.xlu0 24
  %542 = vperm.xlu0 %541, %v342
  %v543 = vpop.permute.xlu0 %542
  %v545 = vadd.f32 %v540, %v543
  %v546 = vadd.f32 %v545, %v337
  %v547 = vmax.f32 %v546, 0.0
  %v548 = vmul.f32 %v547, %v132
  %v549 = vld [vmem:[%s2 + $0x78] sm:$0xff]
  %v550 = vld [vmem:[%s2 + $0x80] sm:$0xff]
  %v551 = vld [vmem:[%s2 + $0x88] sm:$0xff]
  %v552 = vld [vmem:[%s2 + $0x90] sm:$0xff]
  %v553 = vld [vmem:[%s2 + $0x98] sm:$0xff]
  %v554 = vld [vmem:[%s2 + $0xa0] sm:$0xff]
  %v556 = vsel %vm134, %v549, 0
  %v559 = vsel %vm134, %v550, 0
  %v562 = vsel %vm134, %v551, 0
  %564 = vmatprep.subr.mxu0 0.0
  %565 = vmatpush1.msra.mxu0 %v548
  %566 = vmatprep.subr.mxu0 0.0
  %567 = vmatpush1.msra.mxu0 0.0
  %568 = vmatprep.subr.mxu0 0.0
  %569 = vmatpush1.msra.mxu0 0.0
  %570 = vmatprep.subr.mxu0 0.0
  %571 = vmatpush1.msra.mxu0 0.0
  %572 = vmatprep.subr.mxu0 0.0
  %573 = vmatpush1.msra.mxu0 0.0
  %574 = vmatprep.subr.mxu0 0.0
  %575 = vmatpush1.msra.mxu0 0.0
  %576 = vmatprep.subr.mxu0 0.0
  %577 = vmatpush1.msra.mxu0 0.0
  %578 = vmatprep.subr.mxu0 0.0
  %579 = vmatpush1.msra.mxu0 0.0
  %580 = vmatprep.subr.mxu0 0.0
  %581 = vmatpush1.msra.mxu0 0.0
  %582 = vmatprep.subr.mxu0 0.0
  %583 = vmatpush1.msra.mxu0 0.0
  %584 = vmatprep.subr.mxu0 0.0
  %585 = vmatpush1.msra.mxu0 0.0
  %586 = vmatprep.subr.mxu0 0.0
  %587 = vmatpush1.msra.mxu0 0.0
  %588 = vmatprep.subr.mxu0 0.0
  %589 = vmatpush1.msra.mxu0 0.0
  %590 = vmatprep.subr.mxu0 0.0
  %591 = vmatpush1.msra.mxu0 0.0
  %592 = vmatprep.subr.mxu0 0.0
  %593 = vmatpush1.msra.mxu0 0.0
  %594 = vmatprep.subr.mxu0 0.0
  %595 = vmatpush1.msra.mxu0 0.0
  %596 = vmatprep.subr.mxu0 0.0
  %597 = vmatpush1.msra.mxu0 0.0
  %598 = vmatprep.subr.mxu0 0.0
  %599 = vmatpush1.msra.mxu0 0.0
  %600 = vmatprep.subr.mxu0 0.0
  %601 = vmatpush1.msra.mxu0 0.0
  %602 = vmatprep.subr.mxu0 0.0
  %603 = vmatpush1.msra.mxu0 0.0
  %604 = vmatprep.subr.mxu0 0.0
  %605 = vmatpush1.msra.mxu0 0.0
  %606 = vmatprep.subr.mxu0 0.0
  %607 = vmatpush1.msra.mxu0 0.0
  %608 = vmatprep.subr.mxu0 0.0
  %609 = vmatpush1.msra.mxu0 0.0
  %610 = vmatprep.subr.mxu0 0.0
  %611 = vmatpush1.msra.mxu0 0.0
  %612 = vmatprep.subr.mxu0 0.0
  %613 = vmatpush1.msra.mxu0 0.0
  %614 = vmatprep.subr.mxu0 0.0
  %615 = vmatpush1.msra.mxu0 0.0
  %616 = vmatprep.subr.mxu0 0.0
  %617 = vmatpush1.msra.mxu0 0.0
  %618 = vmatprep.subr.mxu0 0.0
  %619 = vmatpush1.msra.mxu0 0.0
  %620 = vmatprep.subr.mxu0 0.0
  %621 = vmatpush1.msra.mxu0 0.0
  %622 = vmatprep.subr.mxu0 0.0
  %623 = vmatpush1.msra.mxu0 0.0
  %624 = vmatprep.subr.mxu0 0.0
  %625 = vmatpush1.msra.mxu0 0.0
  %626 = vmatprep.subr.mxu0 0.0
  %627 = vmatpush1.msra.mxu0 0.0
  %628 = vmatprep.mubr.f32.mxu0 0.0
  %629 = vmatmul.mubr.f32.gmra.mrb[0].mxu0 %v556
  %v630 = vpop.f32.mrb[0].mxu0
  %v631 = vadd.f32 0.0, %v630
  %v632 = vpop.f32.mrb[0].mxu0
  %633 = vmatprep.mubr.f32.mxu0 0.0
  %634 = vmatmul.mubr.f32.gmra.mrb[0].mxu0 %v559
  %v635 = vpop.f32.mrb[0].mxu0
  %v636 = vadd.f32 0.0, %v635
  %v637 = vpop.f32.mrb[0].mxu0
  %638 = vmatprep.mubr.f32.mxu0 0.0
  %639 = vmatmul.mubr.f32.gmra.mrb[0].mxu0 %v562
  %v640 = vpop.f32.mrb[0].mxu0
  %v641 = vadd.f32 0.0, %v640
  %v642 = vpop.f32.mrb[0].mxu0
  %643 = vdwg.mxu0
  %644 = vrot.lane.b32.xlu0 %v631, 4
  %v645 = vpop.permute.xlu0 %644
  %646 = vrot.lane.b32.xlu0 %v641, 124
  %v647 = vpop.permute.xlu0 %646
  %v648 = vadd.f32 %v645, %v636
  %v649 = vadd.f32 %v648, %v647
  %650 = vset.pattern.permute.xlu0 24
  %651 = vperm.xlu0 %650, %v550
  %v652 = vpop.permute.xlu0 %651
  %v654 = vadd.f32 %v649, %v652
  %v655 = vmax.f32 %v654, 0.0
  %v656 = vmul.f32 %v655, %v132
  %v658 = vsel %vm134, %v552, 0
  %v661 = vsel %vm134, %v553, 0
  %v664 = vsel %vm134, %v554, 0
  %666 = vmatprep.subr.mxu0 0.0
  %667 = vmatpush1.msra.mxu0 %v656
  %668 = vmatprep.subr.mxu0 0.0
  %669 = vmatpush1.msra.mxu0 0.0
  %670 = vmatprep.subr.mxu0 0.0
  %671 = vmatpush1.msra.mxu0 0.0
  %672 = vmatprep.subr.mxu0 0.0
  %673 = vmatpush1.msra.mxu0 0.0
  %674 = vmatprep.subr.mxu0 0.0
  %675 = vmatpush1.msra.mxu0 0.0
  %676 = vmatprep.subr.mxu0 0.0
  %677 = vmatpush1.msra.mxu0 0.0
  %678 = vmatprep.subr.mxu0 0.0
  %679 = vmatpush1.msra.mxu0 0.0
  %680 = vmatprep.subr.mxu0 0.0
  %681 = vmatpush1.msra.mxu0 0.0
  %682 = vmatprep.subr.mxu0 0.0
  %683 = vmatpush1.msra.mxu0 0.0
  %684 = vmatprep.subr.mxu0 0.0
  %685 = vmatpush1.msra.mxu0 0.0
  %686 = vmatprep.subr.mxu0 0.0
  %687 = vmatpush1.msra.mxu0 0.0
  %688 = vmatprep.subr.mxu0 0.0
  %689 = vmatpush1.msra.mxu0 0.0
  %690 = vmatprep.subr.mxu0 0.0
  %691 = vmatpush1.msra.mxu0 0.0
  %692 = vmatprep.subr.mxu0 0.0
  %693 = vmatpush1.msra.mxu0 0.0
  %694 = vmatprep.subr.mxu0 0.0
  %695 = vmatpush1.msra.mxu0 0.0
  %696 = vmatprep.subr.mxu0 0.0
  %697 = vmatpush1.msra.mxu0 0.0
  %698 = vmatprep.subr.mxu0 0.0
  %699 = vmatpush1.msra.mxu0 0.0
  %700 = vmatprep.subr.mxu0 0.0
  %701 = vmatpush1.msra.mxu0 0.0
  %702 = vmatprep.subr.mxu0 0.0
  %703 = vmatpush1.msra.mxu0 0.0
  %704 = vmatprep.subr.mxu0 0.0
  %705 = vmatpush1.msra.mxu0 0.0
  %706 = vmatprep.subr.mxu0 0.0
  %707 = vmatpush1.msra.mxu0 0.0
  %708 = vmatprep.subr.mxu0 0.0
  %709 = vmatpush1.msra.mxu0 0.0
  %710 = vmatprep.subr.mxu0 0.0
  %711 = vmatpush1.msra.mxu0 0.0
  %712 = vmatprep.subr.mxu0 0.0
  %713 = vmatpush1.msra.mxu0 0.0
  %714 = vmatprep.subr.mxu0 0.0
  %715 = vmatpush1.msra.mxu0 0.0
  %716 = vmatprep.subr.mxu0 0.0
  %717 = vmatpush1.msra.mxu0 0.0
  %718 = vmatprep.subr.mxu0 0.0
  %719 = vmatpush1.msra.mxu0 0.0
  %720 = vmatprep.subr.mxu0 0.0
  %721 = vmatpush1.msra.mxu0 0.0
  %722 = vmatprep.subr.mxu0 0.0
  %723 = vmatpush1.msra.mxu0 0.0
  %724 = vmatprep.subr.mxu0 0.0
  %725 = vmatpush1.msra.mxu0 0.0
  %726 = vmatprep.subr.mxu0 0.0
  %727 = vmatpush1.msra.mxu0 0.0
  %728 = vmatprep.subr.mxu0 0.0
  %729 = vmatpush1.msra.mxu0 0.0
  %730 = vmatprep.mubr.f32.mxu0 0.0
  %731 = vmatmul.mubr.f32.gmra.mrb[0].mxu0 %v658
  %v732 = vpop.f32.mrb[0].mxu0
  %v733 = vadd.f32 0.0, %v732
  %v734 = vpop.f32.mrb[0].mxu0
  %735 = vmatprep.mubr.f32.mxu0 0.0
  %736 = vmatmul.mubr.f32.gmra.mrb[0].mxu0 %v661
  %v737 = vpop.f32.mrb[0].mxu0
  %v738 = vadd.f32 0.0, %v737
  %v739 = vpop.f32.mrb[0].mxu0
  %740 = vmatprep.mubr.f32.mxu0 0.0
  %741 = vmatmul.mubr.f32.gmra.mrb[0].mxu0 %v664
  %v742 = vpop.f32.mrb[0].mxu0
  %v743 = vadd.f32 0.0, %v742
  %v744 = vpop.f32.mrb[0].mxu0
  %745 = vdwg.mxu0
  %746 = vrot.lane.b32.xlu0 %v733, 4
  %v747 = vpop.permute.xlu0 %746
  %748 = vrot.lane.b32.xlu0 %v743, 124
  %v749 = vpop.permute.xlu0 %748
  %v750 = vadd.f32 %v747, %v738
  %v751 = vadd.f32 %v750, %v749
  %752 = vset.pattern.permute.xlu0 24
  %753 = vperm.xlu0 %752, %v553
  %v754 = vpop.permute.xlu0 %753
  %v756 = vadd.f32 %v751, %v754
  %v757 = vadd.f32 %v756, %v548
  %v758 = vmax.f32 %v757, 0.0
  %v759 = vmul.f32 %v758, %v132
  %v760 = vld [vmem:[%s2 + $0xa8] sm:$0xff]
  %v761 = vld [vmem:[%s2 + $0xb0] sm:$0xff]
  %v762 = vld [vmem:[%s2 + $0xb8] sm:$0xff]
  %v763 = vld [vmem:[%s2 + $0xc0] sm:$0xff]
  %v764 = vld [vmem:[%s2 + $0xc8] sm:$0xff]
  %v765 = vld [vmem:[%s2 + $0xd0] sm:$0xff]
  %v767 = vsel %vm134, %v760, 0
  %v770 = vsel %vm134, %v761, 0
  %v773 = vsel %vm134, %v762, 0
  %775 = vmatprep.subr.mxu0 0.0
  %776 = vmatpush1.msra.mxu0 %v759
  %777 = vmatprep.subr.mxu0 0.0
  %778 = vmatpush1.msra.mxu0 0.0
  %779 = vmatprep.subr.mxu0 0.0
  %780 = vmatpush1.msra.mxu0 0.0
  %781 = vmatprep.subr.mxu0 0.0
  %782 = vmatpush1.msra.mxu0 0.0
  %783 = vmatprep.subr.mxu0 0.0
  %784 = vmatpush1.msra.mxu0 0.0
  %785 = vmatprep.subr.mxu0 0.0
  %786 = vmatpush1.msra.mxu0 0.0
  %787 = vmatprep.subr.mxu0 0.0
  %788 = vmatpush1.msra.mxu0 0.0
  %789 = vmatprep.subr.mxu0 0.0
  %790 = vmatpush1.msra.mxu0 0.0
  %791 = vmatprep.subr.mxu0 0.0
  %792 = vmatpush1.msra.mxu0 0.0
  %793 = vmatprep.subr.mxu0 0.0
  %794 = vmatpush1.msra.mxu0 0.0
  %795 = vmatprep.subr.mxu0 0.0
  %796 = vmatpush1.msra.mxu0 0.0
  %797 = vmatprep.subr.mxu0 0.0
  %798 = vmatpush1.msra.mxu0 0.0
  %799 = vmatprep.subr.mxu0 0.0
  %800 = vmatpush1.msra.mxu0 0.0
  %801 = vmatprep.subr.mxu0 0.0
  %802 = vmatpush1.msra.mxu0 0.0
  %803 = vmatprep.subr.mxu0 0.0
  %804 = vmatpush1.msra.mxu0 0.0
  %805 = vmatprep.subr.mxu0 0.0
  %806 = vmatpush1.msra.mxu0 0.0
  %807 = vmatprep.subr.mxu0 0.0
  %808 = vmatpush1.msra.mxu0 0.0
  %809 = vmatprep.subr.mxu0 0.0
  %810 = vmatpush1.msra.mxu0 0.0
  %811 = vmatprep.subr.mxu0 0.0
  %812 = vmatpush1.msra.mxu0 0.0
  %813 = vmatprep.subr.mxu0 0.0
  %814 = vmatpush1.msra.mxu0 0.0
  %815 = vmatprep.subr.mxu0 0.0
  %816 = vmatpush1.msra.mxu0 0.0
  %817 = vmatprep.subr.mxu0 0.0
  %818 = vmatpush1.msra.mxu0 0.0
  %819 = vmatprep.subr.mxu0 0.0
  %820 = vmatpush1.msra.mxu0 0.0
  %821 = vmatprep.subr.mxu0 0.0
  %822 = vmatpush1.msra.mxu0 0.0
  %823 = vmatprep.subr.mxu0 0.0
  %824 = vmatpush1.msra.mxu0 0.0
  %825 = vmatprep.subr.mxu0 0.0
  %826 = vmatpush1.msra.mxu0 0.0
  %827 = vmatprep.subr.mxu0 0.0
  %828 = vmatpush1.msra.mxu0 0.0
  %829 = vmatprep.subr.mxu0 0.0
  %830 = vmatpush1.msra.mxu0 0.0
  %831 = vmatprep.subr.mxu0 0.0
  %832 = vmatpush1.msra.mxu0 0.0
  %833 = vmatprep.subr.mxu0 0.0
  %834 = vmatpush1.msra.mxu0 0.0
  %835 = vmatprep.subr.mxu0 0.0
  %836 = vmatpush1.msra.mxu0 0.0
  %837 = vmatprep.subr.mxu0 0.0
  %838 = vmatpush1.msra.mxu0 0.0
  %839 = vmatprep.mubr.f32.mxu0 0.0
  %840 = vmatmul.mubr.f32.gmra.mrb[0].mxu0 %v767
  %v841 = vpop.f32.mrb[0].mxu0
  %v842 = vadd.f32 0.0, %v841
  %v843 = vpop.f32.mrb[0].mxu0
  %844 = vmatprep.mubr.f32.mxu0 0.0
  %845 = vmatmul.mubr.f32.gmra.mrb[0].mxu0 %v770
  %v846 = vpop.f32.mrb[0].mxu0
  %v847 = vadd.f32 0.0, %v846
  %v848 = vpop.f32.mrb[0].mxu0
  %849 = vmatprep.mubr.f32.mxu0 0.0
  %850 = vmatmul.mubr.f32.gmra.mrb[0].mxu0 %v773
  %v851 = vpop.f32.mrb[0].mxu0
  %v852 = vadd.f32 0.0, %v851
  %v853 = vpop.f32.mrb[0].mxu0
  %854 = vdwg.mxu0
  %855 = vrot.lane.b32.xlu0 %v842, 8
  %v856 = vpop.permute.xlu0 %855
  %857 = vrot.lane.b32.xlu0 %v852, 120
  %v858 = vpop.permute.xlu0 %857
  %v859 = vadd.f32 %v856, %v847
  %v860 = vadd.f32 %v859, %v858
  %861 = vset.pattern.permute.xlu0 24
  %862 = vperm.xlu0 %861, %v761
  %v863 = vpop.permute.xlu0 %862
  %v865 = vadd.f32 %v860, %v863
  %v866 = vmax.f32 %v865, 0.0
  %v867 = vmul.f32 %v866, %v132
  %v869 = vsel %vm134, %v763, 0
  %v872 = vsel %vm134, %v764, 0
  %v875 = vsel %vm134, %v765, 0
  %877 = vmatprep.subr.mxu0 0.0
  %878 = vmatpush1.msra.mxu0 %v867
  %879 = vmatprep.subr.mxu0 0.0
  %880 = vmatpush1.msra.mxu0 0.0
  %881 = vmatprep.subr.mxu0 0.0
  %882 = vmatpush1.msra.mxu0 0.0
  %883 = vmatprep.subr.mxu0 0.0
  %884 = vmatpush1.msra.mxu0 0.0
  %885 = vmatprep.subr.mxu0 0.0
  %886 = vmatpush1.msra.mxu0 0.0
  %887 = vmatprep.subr.mxu0 0.0
  %888 = vmatpush1.msra.mxu0 0.0
  %889 = vmatprep.subr.mxu0 0.0
  %890 = vmatpush1.msra.mxu0 0.0
  %891 = vmatprep.subr.mxu0 0.0
  %892 = vmatpush1.msra.mxu0 0.0
  %893 = vmatprep.subr.mxu0 0.0
  %894 = vmatpush1.msra.mxu0 0.0
  %895 = vmatprep.subr.mxu0 0.0
  %896 = vmatpush1.msra.mxu0 0.0
  %897 = vmatprep.subr.mxu0 0.0
  %898 = vmatpush1.msra.mxu0 0.0
  %899 = vmatprep.subr.mxu0 0.0
  %900 = vmatpush1.msra.mxu0 0.0
  %901 = vmatprep.subr.mxu0 0.0
  %902 = vmatpush1.msra.mxu0 0.0
  %903 = vmatprep.subr.mxu0 0.0
  %904 = vmatpush1.msra.mxu0 0.0
  %905 = vmatprep.subr.mxu0 0.0
  %906 = vmatpush1.msra.mxu0 0.0
  %907 = vmatprep.subr.mxu0 0.0
  %908 = vmatpush1.msra.mxu0 0.0
  %909 = vmatprep.subr.mxu0 0.0
  %910 = vmatpush1.msra.mxu0 0.0
  %911 = vmatprep.subr.mxu0 0.0
  %912 = vmatpush1.msra.mxu0 0.0
  %913 = vmatprep.subr.mxu0 0.0
  %914 = vmatpush1.msra.mxu0 0.0
  %915 = vmatprep.subr.mxu0 0.0
  %916 = vmatpush1.msra.mxu0 0.0
  %917 = vmatprep.subr.mxu0 0.0
  %918 = vmatpush1.msra.mxu0 0.0
  %919 = vmatprep.subr.mxu0 0.0
  %920 = vmatpush1.msra.mxu0 0.0
  %921 = vmatprep.subr.mxu0 0.0
  %922 = vmatpush1.msra.mxu0 0.0
  %923 = vmatprep.subr.mxu0 0.0
  %924 = vmatpush1.msra.mxu0 0.0
  %925 = vmatprep.subr.mxu0 0.0
  %926 = vmatpush1.msra.mxu0 0.0
  %927 = vmatprep.subr.mxu0 0.0
  %928 = vmatpush1.msra.mxu0 0.0
  %929 = vmatprep.subr.mxu0 0.0
  %930 = vmatpush1.msra.mxu0 0.0
  %931 = vmatprep.subr.mxu0 0.0
  %932 = vmatpush1.msra.mxu0 0.0
  %933 = vmatprep.subr.mxu0 0.0
  %934 = vmatpush1.msra.mxu0 0.0
  %935 = vmatprep.subr.mxu0 0.0
  %936 = vmatpush1.msra.mxu0 0.0
  %937 = vmatprep.subr.mxu0 0.0
  %938 = vmatpush1.msra.mxu0 0.0
  %939 = vmatprep.subr.mxu0 0.0
  %940 = vmatpush1.msra.mxu0 0.0
  %941 = vmatprep.mubr.f32.mxu0 0.0
  %942 = vmatmul.mubr.f32.gmra.mrb[0].mxu0 %v869
  %v943 = vpop.f32.mrb[0].mxu0
  %v944 = vadd.f32 0.0, %v943
  %v945 = vpop.f32.mrb[0].mxu0
  %946 = vmatprep.mubr.f32.mxu0 0.0
  %947 = vmatmul.mubr.f32.gmra.mrb[0].mxu0 %v872
  %v948 = vpop.f32.mrb[0].mxu0
  %v949 = vadd.f32 0.0, %v948
  %v950 = vpop.f32.mrb[0].mxu0
  %951 = vmatprep.mubr.f32.mxu0 0.0
  %952 = vmatmul.mubr.f32.gmra.mrb[0].mxu0 %v875
  %v953 = vpop.f32.mrb[0].mxu0
  %v954 = vadd.f32 0.0, %v953
  %v955 = vpop.f32.mrb[0].mxu0
  %956 = vdwg.mxu0
  %957 = vrot.lane.b32.xlu0 %v944, 8
  %v958 = vpop.permute.xlu0 %957
  %959 = vrot.lane.b32.xlu0 %v954, 120
  %v960 = vpop.permute.xlu0 %959
  %v961 = vadd.f32 %v958, %v949
  %v962 = vadd.f32 %v961, %v960
  %963 = vset.pattern.permute.xlu0 24
  %964 = vperm.xlu0 %963, %v764
  %v965 = vpop.permute.xlu0 %964
  %v967 = vadd.f32 %v962, %v965
  %v968 = vadd.f32 %v967, %v759
  %v969 = vmax.f32 %v968, 0.0
  %v970 = vmul.f32 %v969, %v132
  %v971 = vld [vmem:[%s1] sm:$0xff]
  %v972 = vld [vmem:[%s1 + $0x8] sm:$0xff]
  %v973 = vld [vmem:[%s1 + $0x10] sm:$0xff]
  %v974 = vld [vmem:[%s1 + $0x18] sm:$0xff]
  %v975 = vld [vmem:[%s1 + $0x20] sm:$0xff]
  %v976 = vld [vmem:[%s1 + $0x28] sm:$0xff]
  %v977 = vld [vmem:[%s1 + $0x30] sm:$0xff]
  %v978 = vld [vmem:[%s1 + $0x38] sm:$0xff]
  %v979 = vld [vmem:[%s1 + $0x40] sm:$0xff]
  %v980 = vld [vmem:[%s1 + $0x48] sm:$0xff]
  %v981 = vld [vmem:[%s1 + $0x50] sm:$0xff]
  %v982 = vld [vmem:[%s1 + $0x58] sm:$0xff]
  %v983 = vld [vmem:[%s1 + $0x60] sm:$0xff]
  %v984 = vld [vmem:[%s1 + $0x68] sm:$0xff]
  %v985 = vld [vmem:[%s1 + $0x70] sm:$0xff]
  %v986 = vld [vmem:[%s1 + $0x78] sm:$0xff]
  %987 = vmatprep.subr.mxu0 0.0
  %988 = vmatpush1.msra.mxu0 %v971
  %989 = vmatprep.subr.mxu0 0.0
  %990 = vmatpush1.msra.mxu0 %v972
  %991 = vmatprep.subr.mxu0 0.0
  %992 = vmatpush1.msra.mxu0 %v973
  %993 = vmatprep.subr.mxu0 0.0
  %994 = vmatpush1.msra.mxu0 %v974
  %995 = vmatprep.subr.mxu0 0.0
  %996 = vmatpush1.msra.mxu0 %v975
  %997 = vmatprep.subr.mxu0 0.0
  %998 = vmatpush1.msra.mxu0 %v976
  %999 = vmatprep.subr.mxu0 0.0
  %1000 = vmatpush1.msra.mxu0 %v977
  %1001 = vmatprep.subr.mxu0 0.0
  %1002 = vmatpush1.msra.mxu0 %v978
  %1003 = vmatprep.subr.mxu0 0.0
  %1004 = vmatpush1.msra.mxu0 %v979
  %1005 = vmatprep.subr.mxu0 0.0
  %1006 = vmatpush1.msra.mxu0 %v980
  %1007 = vmatprep.subr.mxu0 0.0
  %1008 = vmatpush1.msra.mxu0 %v981
  %1009 = vmatprep.subr.mxu0 0.0
  %1010 = vmatpush1.msra.mxu0 %v982
  %1011 = vmatprep.subr.mxu0 0.0
  %1012 = vmatpush1.msra.mxu0 %v983
  %1013 = vmatprep.subr.mxu0 0.0
  %1014 = vmatpush1.msra.mxu0 %v984
  %1015 = vmatprep.subr.mxu0 0.0
  %1016 = vmatpush1.msra.mxu0 %v985
  %1017 = vmatprep.subr.mxu0 0.0
  %1018 = vmatpush1.msra.mxu0 %v986
  %1019 = vmatprep.subr.mxu0 0.0
  %1020 = vmatpush1.msra.mxu0 0.0
  %1021 = vmatprep.subr.mxu0 0.0
  %1022 = vmatpush1.msra.mxu0 0.0
  %1023 = vmatprep.subr.mxu0 0.0
  %1024 = vmatpush1.msra.mxu0 0.0
  %1025 = vmatprep.subr.mxu0 0.0
  %1026 = vmatpush1.msra.mxu0 0.0
  %1027 = vmatprep.subr.mxu0 0.0
  %1028 = vmatpush1.msra.mxu0 0.0
  %1029 = vmatprep.subr.mxu0 0.0
  %1030 = vmatpush1.msra.mxu0 0.0
  %1031 = vmatprep.subr.mxu0 0.0
  %1032 = vmatpush1.msra.mxu0 0.0
  %1033 = vmatprep.subr.mxu0 0.0
  %1034 = vmatpush1.msra.mxu0 0.0
  %1035 = vmatprep.subr.mxu0 0.0
  %1036 = vmatpush1.msra.mxu0 0.0
  %1037 = vmatprep.subr.mxu0 0.0
  %1038 = vmatpush1.msra.mxu0 0.0
  %1039 = vmatprep.subr.mxu0 0.0
  %1040 = vmatpush1.msra.mxu0 0.0
  %1041 = vmatprep.subr.mxu0 0.0
  %1042 = vmatpush1.msra.mxu0 0.0
  %1043 = vmatprep.subr.mxu0 0.0
  %1044 = vmatpush1.msra.mxu0 0.0
  %1045 = vmatprep.subr.mxu0 0.0
  %1046 = vmatpush1.msra.mxu0 0.0
  %1047 = vmatprep.subr.mxu0 0.0
  %1048 = vmatpush1.msra.mxu0 0.0
  %1049 = vmatprep.subr.mxu0 0.0
  %1050 = vmatpush1.msra.mxu0 0.0
  %1051 = vmatprep.mubr.f32.mxu0 0.0
  %1052 = vmatmul.mubr.f32.gmra.mrb[0].mxu0 %v970
  %v1053 = vpop.f32.mrb[0].mxu0
  %v1054 = vadd.f32 0.0, %v1053
  %v1055 = vpop.f32.mrb[0].mxu0
  %1056 = vdwg.mxu0
  %v1057 = vld [vmem:[%s2 + $0xd8] sm:$0xff]
  %1059 = vset.pattern.permute.xlu0 24
  %1060 = vperm.xlu0 %1059, %v1057
  %v1061 = vpop.permute.xlu0 %1060
  %v1063 = vsel %vm134, %v1057, 0
  %1065 = vmatprep.subr.mxu0 0.0
  %1066 = vmatpush1.msra.mxu0 %v1054
  %1067 = vmatprep.subr.mxu0 0.0
  %1068 = vmatpush1.msra.mxu0 0.0
  %1069 = vmatprep.subr.mxu0 0.0
  %1070 = vmatpush1.msra.mxu0 0.0
  %1071 = vmatprep.subr.mxu0 0.0
  %1072 = vmatpush1.msra.mxu0 0.0
  %1073 = vmatprep.subr.mxu0 0.0
  %1074 = vmatpush1.msra.mxu0 0.0
  %1075 = vmatprep.subr.mxu0 0.0
  %1076 = vmatpush1.msra.mxu0 0.0
  %1077 = vmatprep.subr.mxu0 0.0
  %1078 = vmatpush1.msra.mxu0 0.0
  %1079 = vmatprep.subr.mxu0 0.0
  %1080 = vmatpush1.msra.mxu0 0.0
  %1081 = vmatprep.subr.mxu0 0.0
  %1082 = vmatpush1.msra.mxu0 0.0
  %1083 = vmatprep.subr.mxu0 0.0
  %1084 = vmatpush1.msra.mxu0 0.0
  %1085 = vmatprep.subr.mxu0 0.0
  %1086 = vmatpush1.msra.mxu0 0.0
  %1087 = vmatprep.subr.mxu0 0.0
  %1088 = vmatpush1.msra.mxu0 0.0
  %1089 = vmatprep.subr.mxu0 0.0
  %1090 = vmatpush1.msra.mxu0 0.0
  %1091 = vmatprep.subr.mxu0 0.0
  %1092 = vmatpush1.msra.mxu0 0.0
  %1093 = vmatprep.subr.mxu0 0.0
  %1094 = vmatpush1.msra.mxu0 0.0
  %1095 = vmatprep.subr.mxu0 0.0
  %1096 = vmatpush1.msra.mxu0 0.0
  %1097 = vmatprep.subr.mxu0 0.0
  %1098 = vmatpush1.msra.mxu0 0.0
  %1099 = vmatprep.subr.mxu0 0.0
  %1100 = vmatpush1.msra.mxu0 0.0
  %1101 = vmatprep.subr.mxu0 0.0
  %1102 = vmatpush1.msra.mxu0 0.0
  %1103 = vmatprep.subr.mxu0 0.0
  %1104 = vmatpush1.msra.mxu0 0.0
  %1105 = vmatprep.subr.mxu0 0.0
  %1106 = vmatpush1.msra.mxu0 0.0
  %1107 = vmatprep.subr.mxu0 0.0
  %1108 = vmatpush1.msra.mxu0 0.0
  %1109 = vmatprep.subr.mxu0 0.0
  %1110 = vmatpush1.msra.mxu0 0.0
  %1111 = vmatprep.subr.mxu0 0.0
  %1112 = vmatpush1.msra.mxu0 0.0
  %1113 = vmatprep.subr.mxu0 0.0
  %1114 = vmatpush1.msra.mxu0 0.0
  %1115 = vmatprep.subr.mxu0 0.0
  %1116 = vmatpush1.msra.mxu0 0.0
  %1117 = vmatprep.subr.mxu0 0.0
  %1118 = vmatpush1.msra.mxu0 0.0
  %1119 = vmatprep.subr.mxu0 0.0
  %1120 = vmatpush1.msra.mxu0 0.0
  %1121 = vmatprep.subr.mxu0 0.0
  %1122 = vmatpush1.msra.mxu0 0.0
  %1123 = vmatprep.subr.mxu0 0.0
  %1124 = vmatpush1.msra.mxu0 0.0
  %1125 = vmatprep.subr.mxu0 0.0
  %1126 = vmatpush1.msra.mxu0 0.0
  %1127 = vmatprep.subr.mxu0 0.0
  %1128 = vmatpush1.msra.mxu0 0.0
  %1129 = vmatprep.mubr.f32.mxu0 0.0
  %1130 = vmatmul.mubr.f32.gmra.mrb[0].mxu0 %v1063
  %v1131 = vpop.f32.mrb[0].mxu0
  %v1132 = vadd.f32 %v1061, %v1131
  %v1133 = vpop.f32.mrb[0].mxu0
  %1134 = vdwg.mxu0
  %1135 = vst [vmem:[%s3] sm:$0xff] %v1132
  // Predicated region
  $region14: #{tcn_forward.1} parent=0 // pred_check
    _
  $region15: #{tcn_forward.1} parent=0 // pred_check_branch
    %1137 = sbr.rel (0) target = $region17
  $region16: #{tcn_forward.1} parent=0 // pred_region
    _
  $region17: #{tcn_forward.1} parent=0 // pred_fallthru
    _
  // Predicated region
  $region18: #{tcn_forward.1} parent=0 // pred_check
    _
  $region19: #{tcn_forward.1} parent=0 // pred_check_branch
    %1139 = sbr.rel (0) target = $region21
  $region20: #{tcn_forward.1} parent=0 // pred_region
    _
  $region21: #{tcn_forward.1} parent=0 // pred_fallthru
    _

</llo_original>
